<compile_context>
chip_gen: v6e
topology: v6e:2x2x1
jax: 0.10.0
libtpu: 0.0.40
codegen_flags: <defaults>
</compile_context>

<pallas_src>
import functools
import math

import jax
import jax.numpy as jnp
from jax.experimental import pallas as pl
from jax.experimental.pallas import tpu as pltpu


def _layernorm(x, gamma, beta, eps=1e-5):
    mu = jnp.mean(x, axis=-1, keepdims=True)
    var = jnp.mean((x - mu) ** 2, axis=-1, keepdims=True)
    return (x - mu) * jax.lax.rsqrt(var + eps) * gamma + beta


def transformer_block_kernel(
    v_ref, k_ref, q_ref, *rest,
    heads, head_dim, nb, lq, lk, lv, embed_size, has_mask,
):
    E = embed_size
    D = head_dim
    bf16 = jnp.bfloat16
    f32 = jnp.float32

    if has_mask:
        bias_ref = rest[0]
        rest = rest[1:]
    else:
        bias_ref = None
    (wv_ref, wk_ref, wq_ref, wo_ref, bo_ref, g1_ref, b1_ref,
     w1_ref, bb1_ref, w2_ref, bb2_ref, g2_ref, b2_ref, out_ref) = rest

    # Flatten the nb batch rows of this grid step into M for full-width matmuls.
    q_res = q_ref[...].reshape(nb * lq, E)              # f32, kept for residual
    v_bf = v_ref[...].reshape(nb * lv, E).astype(bf16)
    k_bf = k_ref[...].reshape(nb * lk, E).astype(bf16)
    q_bf = q_res.astype(bf16)

    # Fused block-diagonal per-head projections (wq carries 1/sqrt(E)).
    vproj = jnp.dot(v_bf, wv_ref[...], preferred_element_type=f32)
    kproj = jnp.dot(k_bf, wk_ref[...], preferred_element_type=f32)
    qproj = jnp.dot(q_bf, wq_ref[...], preferred_element_type=f32)

    if has_mask:
        bias = bias_ref[...].astype(f32)                # (nb, Lq, Lk) additive
    wo_all = wo_ref[...]                                # (E, E) bf16, transposed

    # Attention: all nb batch rows per head in one batched einsum pair.  With
    # the model's heads=1 this loop disappears, the slices below are full-width
    # no-ops, and every store stays lane-dense.
    attn_fc = None
    for h in range(heads):
        lo = h * D
        q3 = qproj[:, lo:lo + D].reshape(nb, lq, D).astype(bf16)
        k3 = kproj[:, lo:lo + D].reshape(nb, lk, D).astype(bf16)
        v3 = vproj[:, lo:lo + D].reshape(nb, lv, D).astype(bf16)

        energy = jnp.einsum('bqd,bkd->bqk', q3, k3,
                            preferred_element_type=f32)          # (nb, Lq, Lk)
        if has_mask:
            energy = energy + bias
        energy = energy - jnp.max(energy, axis=-1, keepdims=True)
        p = jnp.exp(energy)
        att = p * pl.reciprocal(jnp.sum(p, axis=-1, keepdims=True), approx=True)

        ctx = jnp.einsum('bqk,bkd->bqd', att.astype(bf16), v3,
                         preferred_element_type=f32)             # (nb, Lq, D)
        # Fold this head directly into fc_out (lane-dense (nb*Lq, E) result);
        # no D-wide head slab is ever materialized or stored.
        part = jnp.dot(ctx.reshape(nb * lq, D).astype(bf16),
                       wo_all[lo:lo + D, :], preferred_element_type=f32)
        attn_fc = part if attn_fc is None else attn_fc + part

    attn_fc = attn_fc + bo_ref[...]

    # Residual + LayerNorm1 (dropout == identity).
    x = _layernorm(attn_fc + q_res, g1_ref[...], b1_ref[...])

    # Feed-forward MLP (bf16 MXU operands, f32 accumulation).
    h1 = jnp.dot(x.astype(bf16), w1_ref[...], preferred_element_type=f32) + bb1_ref[...]
    h1 = jnp.maximum(h1, 0.0)
    ff = jnp.dot(h1.astype(bf16), w2_ref[...], preferred_element_type=f32) + bb2_ref[...]

    # Residual + LayerNorm2; single lane-dense store.
    out = _layernorm(ff + x, g2_ref[...], b2_ref[...])
    out_ref[...] = out.reshape(nb, lq, E).astype(out_ref.dtype)


def _tensorcores_per_device():
    """1 on single-TensorCore chips (v2/v3 per-core devices, v5e, v6e); 2 where
    a 'parallel' grid axis is sharded across TensorCores (v4/v5p megacore, v7x)."""
    try:
        kind = jax.devices()[0].device_kind.lower()
    except Exception:
        return 2
    for tag in ("v2", "v3", "v5e", "v5 lite", "v5lite", "v6e", "v6 lite", "v6lite"):
        if tag in kind:
            return 1
    return 2


def _choose_batch_block(n, num_tc, per_row_bytes, fixed_bytes, budget):
    """Largest divisor of n that (a) leaves >= num_tc grid steps where that
    matters and (b) keeps the rough per-step VMEM estimate under budget."""
    want_steps = min(num_tc, n)
    best = 1
    for nb in range(1, n + 1):
        if n % nb:
            continue
        if n // nb < want_steps:
            continue
        if fixed_bytes + nb * per_row_bytes > budget:
            continue
        best = nb
    return best


def transformer_block(value, key, query, mask, params, *, heads, batch_block=None,
                      vmem_budget_bytes=32 * 1024 * 1024):
    N, Lq, E = query.shape
    Lk = key.shape[1]
    Lv = value.shape[1]
    assert E % heads == 0
    D = E // heads
    H = params["w1"].shape[0]
    has_mask = mask is not None

    # Host-side weight packing: per-head (D,D) projections fused into one
    # block-diagonal (E,E) matrix, pre-transposed for `x @ W`, softmax scale
    # folded into wq, and everything the MXU touches packed as bf16.
    scale = 1.0 / math.sqrt(float(E))
    eye_h = jnp.eye(heads, dtype=jnp.float32)
    wv_bd = jnp.kron(eye_h, params["wv"].T).astype(jnp.bfloat16)
    wk_bd = jnp.kron(eye_h, params["wk"].T).astype(jnp.bfloat16)
    wq_bd = (jnp.kron(eye_h, params["wq"].T) * scale).astype(jnp.bfloat16)
    wo_t = params["wo"].T.astype(jnp.bfloat16)
    w1_t = params["w1"].T.astype(jnp.bfloat16)
    w2_t = params["w2"].T.astype(jnp.bfloat16)

    # Mask -> additive bias precomputed host-side in bf16 (half the HBM bytes
    # of an f32 mask); skipped entirely when mask is None (the model's case).
    if has_mask:
        bias = jnp.where(mask == 0, jnp.float32(-1e20),
                         jnp.float32(0.0)).astype(jnp.bfloat16)

    # Generation-aware grid sizing with a rough per-step VMEM estimate.
    num_tc = _tensorcores_per_device()
    per_row = 2 * 4 * (Lv + Lk + 2 * Lq) * E                 # double-buffered acts + out
    if has_mask:
        per_row += 2 * 2 * Lq * Lk                           # double-buffered bf16 bias
    per_row += 4 * (heads * 2 * Lq * Lk + Lq * (6 * E + 2 * H))   # live intermediates (rough)
    fixed_bytes = 2 * (4 * E * E + 2 * E * H) + 4 * (6 * E + H)   # single-buffered consts
    if batch_block is None:
        nb = _choose_batch_block(N, num_tc, per_row, fixed_bytes, vmem_budget_bytes)
    else:
        nb = batch_block
    assert N % nb == 0, "batch size must be divisible by batch_block"
    grid_n = N // nb
    vmem_limit = int(min(48 * 1024 * 1024,
                         max(32 * 1024 * 1024, fixed_bytes + nb * per_row)))

    kernel = functools.partial(
        transformer_block_kernel, heads=heads, head_dim=D,
        nb=nb, lq=Lq, lk=Lk, lv=Lv, embed_size=E, has_mask=has_mask)

    def act_spec(seq_len):
        return pl.BlockSpec((nb, seq_len, E), lambda n: (n, 0, 0))

    # Constant operands: whole array resident in VMEM once (no double-buffer).
    const_vmem = pl.BlockSpec(memory_space=pltpu.MemorySpace.VMEM)

    in_specs = [act_spec(Lv), act_spec(Lk), act_spec(Lq)]
    args = [value, key, query]
    if has_mask:
        in_specs.append(pl.BlockSpec((nb, Lq, Lk), lambda n: (n, 0, 0)))
        args.append(bias)
    const_args = [wv_bd, wk_bd, wq_bd, wo_t, params["bo"],
                  params["g1"], params["b1"],
                  w1_t, params["bb1"], w2_t, params["bb2"],
                  params["g2"], params["b2"]]
    in_specs += [const_vmem] * len(const_args)
    args += const_args

    # Advisory cost estimate (constant weights are fetched once per call).
    flops = N * (
        2 * (Lv + Lk + Lq) * E * E        # fused projections
        + 4 * Lq * Lk * E                 # QK^T + att@V across all heads
        + 2 * Lq * E * E                  # fc_out
        + 4 * Lq * E * H)                 # MLP
    transcendentals = N * (heads * Lq * (Lk + 1) + 2 * Lq)
    bytes_accessed = (4 * N * (Lv + Lk + 2 * Lq) * E
                      + (2 * N * Lq * Lk if has_mask else 0)
                      + fixed_bytes)

    out = pl.pallas_call(
        kernel,
        out_shape=jax.ShapeDtypeStruct((N, Lq, E), jnp.float32),
        grid=(grid_n,),
        in_specs=in_specs,
        out_specs=pl.BlockSpec((nb, Lq, E), lambda n: (n, 0, 0)),
        compiler_params=pltpu.CompilerParams(
            dimension_semantics=("parallel",),
            vmem_limit_bytes=vmem_limit),
        cost_estimate=pl.CostEstimate(
            flops=flops, transcendentals=transcendentals,
            bytes_accessed=bytes_accessed),
    )(*args)
    return out


def _reference(value, key, query, mask, params, *, heads):
    """Pure-JAX (f32) mirror of the PyTorch forward, for verification."""
    N, Lq, E = query.shape
    D = E // heads
    v = value.reshape(N, -1, heads, D) @ params["wv"].T
    k = key.reshape(N, -1, heads, D) @ params["wk"].T
    q = query.reshape(N, -1, heads, D) @ params["wq"].T
    energy = jnp.einsum("nqhd,nkhd->nhqk", q, k)
    if mask is not None:
        energy = jnp.where(mask[:, None, :, :] == 0, -1e20, energy)
    att = jax.nn.softmax(energy / math.sqrt(E), axis=3)
    out = jnp.einsum("nhql,nlhd->nqhd", att, v).reshape(N, Lq, E)
    out = out @ params["wo"].T + params["bo"][0]

    def ln(x, g, b):
        mu = jnp.mean(x, -1, keepdims=True)
        var = jnp.mean((x - mu) ** 2, -1, keepdims=True)
        return (x - mu) / jnp.sqrt(var + 1e-5) * g[0] + b[0]

    x = ln(out + query, params["g1"], params["b1"])
    ff = (jnp.maximum(x @ params["w1"].T + params["bb1"][0], 0.0)
          @ params["w2"].T + params["bb2"][0])
    return ln(ff + x, params["g2"], params["b2"])


def _make_params(key, E, heads, H):
    D = E // heads
    ks = jax.random.split(key, 9)

    def init(k, shape, scale=0.1):
        return (scale * jax.random.normal(k, shape)).astype(jnp.float32)

    return {
        "wv": init(ks[0], (D, D)), "wk": init(ks[1], (D, D)), "wq": init(ks[2], (D, D)),
        "wo": init(ks[3], (E, E)), "bo": init(ks[4], (1, E)),
        "g1": jnp.ones((1, E), jnp.float32), "b1": jnp.zeros((1, E), jnp.float32),
        "w1": init(ks[5], (H, E)), "bb1": init(ks[6], (1, H)),
        "w2": init(ks[7], (E, H)), "bb2": init(ks[8], (1, E)),
        "g2": jnp.ones((1, E), jnp.float32), "b2": jnp.zeros((1, E), jnp.float32),
    }


if __name__ == "__main__":
    root = jax.random.PRNGKey(0)
    k_par, k_v, k_k, k_q, k2_par, k2_v, k2_k, k2_q = jax.random.split(root, 8)

    # 1) The real model's configuration: heads=1, forward_expansion=2, mask=None.
    #    E=128 is a small lane-dense stand-in for the real embed sizes (229/458).
    N, L, E, heads, fwd_exp = 4, 16, 128, 1, 2
    H = fwd_exp * E
    params = _make_params(k_par, E, heads, H)
    value = jax.random.normal(k_v, (N, L, E), jnp.float32)
    key_in = jax.random.normal(k_k, (N, L, E), jnp.float32)
    query = jax.random.normal(k_q, (N, L, E), jnp.float32)

    out = jax.block_until_ready(
        transformer_block(value, key_in, query, None, params, heads=heads))
    ref = _reference(value, key_in, query, None, params, heads=heads)
    assert out.shape == (N, L, E)
    diff = jnp.abs(out - ref)
    max_err = float(jnp.max(diff))
    mean_err = float(jnp.mean(diff))
    # bf16 MXU operands vs. an all-f32 reference -> ~1e-2-level differences.
    assert max_err < 8e-2 and mean_err < 1.5e-2, (
        f"no-mask case: max abs err = {max_err}, mean abs err = {mean_err}")

    # 2) Generic path: multi-head + causal mask (exercises the mask bias and
    #    the per-head loop; still verified against the f32 reference).
    N2, L2, E2, heads2 = 2, 8, 64, 2
    H2 = 2 * E2
    params2 = _make_params(k2_par, E2, heads2, H2)
    v2 = jax.random.normal(k2_v, (N2, L2, E2), jnp.float32)
    key2 = jax.random.normal(k2_k, (N2, L2, E2), jnp.float32)
    q2 = jax.random.normal(k2_q, (N2, L2, E2), jnp.float32)
    mask2 = jnp.tile(jnp.tril(jnp.ones((L2, L2), jnp.float32))[None], (N2, 1, 1))

    out2 = jax.block_until_ready(
        transformer_block(v2, key2, q2, mask2, params2, heads=heads2))
    ref2 = _reference(v2, key2, q2, mask2, params2, heads=heads2)
    diff2 = jnp.abs(out2 - ref2)
    max_err2 = float(jnp.max(diff2))
    mean_err2 = float(jnp.mean(diff2))
    assert max_err2 < 8e-2 and mean_err2 < 1.5e-2, (
        f"masked case: max abs err = {max_err2}, mean abs err = {mean_err2}")

    print("KERNEL_OK")
</pallas_src>

<mosaic_0001>
module attributes {stable_mosaic.version = 11 : i64} {
  func.func @transformer_block_kernel(%arg0: i32, %arg1: memref<2x16x128xf32, #tpu.memory_space<vmem>>, %arg2: memref<2x16x128xf32, #tpu.memory_space<vmem>>, %arg3: memref<2x16x128xf32, #tpu.memory_space<vmem>>, %arg4: memref<128x128xbf16, #tpu.memory_space<vmem>>, %arg5: memref<128x128xbf16, #tpu.memory_space<vmem>>, %arg6: memref<128x128xbf16, #tpu.memory_space<vmem>>, %arg7: memref<128x128xbf16, #tpu.memory_space<vmem>>, %arg8: memref<1x128xf32, #tpu.memory_space<vmem>>, %arg9: memref<1x128xf32, #tpu.memory_space<vmem>>, %arg10: memref<1x128xf32, #tpu.memory_space<vmem>>, %arg11: memref<128x256xbf16, #tpu.memory_space<vmem>>, %arg12: memref<1x256xf32, #tpu.memory_space<vmem>>, %arg13: memref<256x128xbf16, #tpu.memory_space<vmem>>, %arg14: memref<1x128xf32, #tpu.memory_space<vmem>>, %arg15: memref<1x128xf32, #tpu.memory_space<vmem>>, %arg16: memref<1x128xf32, #tpu.memory_space<vmem>>, %arg17: memref<2x16x128xf32, #tpu.memory_space<vmem>>) attributes {dimension_semantics = [#tpu.dimension_semantics<parallel>], iteration_bounds = array<i64: 2>, scalar_prefetch = 0 : i64, scratch_operands = 0 : i64, tpu.core_type = #tpu.core_type<tc>, window_params = [{transform_indices = @transform_0, window_bounds = array<i64: 2, 16, 128>}, {transform_indices = @transform_1, window_bounds = array<i64: 2, 16, 128>}, {transform_indices = @transform_2, window_bounds = array<i64: 2, 16, 128>}, {pipeline_mode = #tpu.pipeline_mode<synchronous>, transform_indices = @transform_3, window_bounds = array<i64: 128, 128>}, {pipeline_mode = #tpu.pipeline_mode<synchronous>, transform_indices = @transform_4, window_bounds = array<i64: 128, 128>}, {pipeline_mode = #tpu.pipeline_mode<synchronous>, transform_indices = @transform_5, window_bounds = array<i64: 128, 128>}, {pipeline_mode = #tpu.pipeline_mode<synchronous>, transform_indices = @transform_6, window_bounds = array<i64: 128, 128>}, {pipeline_mode = #tpu.pipeline_mode<synchronous>, transform_indices = @transform_7, window_bounds = array<i64: 1, 128>}, {pipeline_mode = #tpu.pipeline_mode<synchronous>, transform_indices = @transform_8, window_bounds = array<i64: 1, 128>}, {pipeline_mode = #tpu.pipeline_mode<synchronous>, transform_indices = @transform_9, window_bounds = array<i64: 1, 128>}, {pipeline_mode = #tpu.pipeline_mode<synchronous>, transform_indices = @transform_10, window_bounds = array<i64: 128, 256>}, {pipeline_mode = #tpu.pipeline_mode<synchronous>, transform_indices = @transform_11, window_bounds = array<i64: 1, 256>}, {pipeline_mode = #tpu.pipeline_mode<synchronous>, transform_indices = @transform_12, window_bounds = array<i64: 256, 128>}, {pipeline_mode = #tpu.pipeline_mode<synchronous>, transform_indices = @transform_13, window_bounds = array<i64: 1, 128>}, {pipeline_mode = #tpu.pipeline_mode<synchronous>, transform_indices = @transform_14, window_bounds = array<i64: 1, 128>}, {pipeline_mode = #tpu.pipeline_mode<synchronous>, transform_indices = @transform_15, window_bounds = array<i64: 1, 128>}, {transform_indices = @transform_16, window_bounds = array<i64: 2, 16, 128>}]} {
    %c0 = arith.constant 0 : index
    %c0_0 = arith.constant 0 : index
    %c0_1 = arith.constant 0 : index
    %0 = vector.load %arg3[%c0, %c0_0, %c0_1] : memref<2x16x128xf32, #tpu.memory_space<vmem>>, vector<2x16x128xf32>
    %1 = vector.shape_cast %0 : vector<2x16x128xf32> to vector<32x128xf32>
    %c0_2 = arith.constant 0 : index
    %c0_3 = arith.constant 0 : index
    %c0_4 = arith.constant 0 : index
    %2 = vector.load %arg1[%c0_2, %c0_3, %c0_4] : memref<2x16x128xf32, #tpu.memory_space<vmem>>, vector<2x16x128xf32>
    %3 = vector.shape_cast %2 : vector<2x16x128xf32> to vector<32x128xf32>
    %4 = arith.truncf %3 : vector<32x128xf32> to vector<32x128xbf16>
    %c0_5 = arith.constant 0 : index
    %c0_6 = arith.constant 0 : index
    %c0_7 = arith.constant 0 : index
    %5 = vector.load %arg2[%c0_5, %c0_6, %c0_7] : memref<2x16x128xf32, #tpu.memory_space<vmem>>, vector<2x16x128xf32>
    %6 = vector.shape_cast %5 : vector<2x16x128xf32> to vector<32x128xf32>
    %7 = arith.truncf %6 : vector<32x128xf32> to vector<32x128xbf16>
    %8 = arith.truncf %1 : vector<32x128xf32> to vector<32x128xbf16>
    %c0_8 = arith.constant 0 : index
    %c0_9 = arith.constant 0 : index
    %9 = vector.load %arg4[%c0_8, %c0_9] : memref<128x128xbf16, #tpu.memory_space<vmem>>, vector<128x128xbf16>
    %cst = arith.constant dense<0.000000e+00> : vector<32x128xf32>
    %10 = tpu.matmul %4, %9, %cst {dimension_numbers = #tpu.dot_dimension_numbers<[1], [0], [0], [1], [0, 0, 1, 1], [], []>} : vector<32x128xbf16>, vector<128x128xbf16>, vector<32x128xf32> -> vector<32x128xf32>
    %c0_10 = arith.constant 0 : index
    %c0_11 = arith.constant 0 : index
    %11 = vector.load %arg5[%c0_10, %c0_11] : memref<128x128xbf16, #tpu.memory_space<vmem>>, vector<128x128xbf16>
    %cst_12 = arith.constant dense<0.000000e+00> : vector<32x128xf32>
    %12 = tpu.matmul %7, %11, %cst_12 {dimension_numbers = #tpu.dot_dimension_numbers<[1], [0], [0], [1], [0, 0, 1, 1], [], []>} : vector<32x128xbf16>, vector<128x128xbf16>, vector<32x128xf32> -> vector<32x128xf32>
    %c0_13 = arith.constant 0 : index
    %c0_14 = arith.constant 0 : index
    %13 = vector.load %arg6[%c0_13, %c0_14] : memref<128x128xbf16, #tpu.memory_space<vmem>>, vector<128x128xbf16>
    %cst_15 = arith.constant dense<0.000000e+00> : vector<32x128xf32>
    %14 = tpu.matmul %8, %13, %cst_15 {dimension_numbers = #tpu.dot_dimension_numbers<[1], [0], [0], [1], [0, 0, 1, 1], [], []>} : vector<32x128xbf16>, vector<128x128xbf16>, vector<32x128xf32> -> vector<32x128xf32>
    %c0_16 = arith.constant 0 : index
    %c0_17 = arith.constant 0 : index
    %15 = vector.load %arg7[%c0_16, %c0_17] : memref<128x128xbf16, #tpu.memory_space<vmem>>, vector<128x128xbf16>
    %16 = vector.shape_cast %14 : vector<32x128xf32> to vector<2x16x128xf32>
    %17 = arith.truncf %16 : vector<2x16x128xf32> to vector<2x16x128xbf16>
    %18 = vector.shape_cast %12 : vector<32x128xf32> to vector<2x16x128xf32>
    %19 = arith.truncf %18 : vector<2x16x128xf32> to vector<2x16x128xbf16>
    %20 = vector.shape_cast %10 : vector<32x128xf32> to vector<2x16x128xf32>
    %21 = arith.truncf %20 : vector<2x16x128xf32> to vector<2x16x128xbf16>
    "tpu.trace_start"() <{level = 10 : i32, message = "bqd,bkd->bqk"}> : () -> ()
    %cst_18 = arith.constant dense<0.000000e+00> : vector<2x16x16xf32>
    %22 = tpu.matmul %17, %19, %cst_18 {dimension_numbers = #tpu.dot_dimension_numbers<[2], [2], [1], [1], [0, 0, 0, 1, 1, 1], [0], [0]>} : vector<2x16x128xbf16>, vector<2x16x128xbf16>, vector<2x16x16xf32> -> vector<2x16x16xf32>
    "tpu.trace_stop"() : () -> ()
    %cst_19 = arith.constant dense<0xFF800000> : vector<2x16xf32>
    %23 = vector.multi_reduction <maximumf>, %22, %cst_19 [2] : vector<2x16x16xf32> to vector<2x16xf32>
    %24 = vector.shape_cast %23 : vector<2x16xf32> to vector<2x16x1xf32>
    %25 = vector.broadcast %24 : vector<2x16x1xf32> to vector<2x16x16xf32>
    %26 = arith.subf %22, %25 : vector<2x16x16xf32>
    %27 = math.exp %26 : vector<2x16x16xf32>
    %cst_20 = arith.constant dense<0.000000e+00> : vector<2x16xf32>
    %28 = vector.multi_reduction <add>, %27, %cst_20 [2] : vector<2x16x16xf32> to vector<2x16xf32>
    %29 = vector.shape_cast %28 : vector<2x16xf32> to vector<2x16x1xf32>
    %30 = tpu.reciprocal %29 {approx = true} : vector<2x16x1xf32> -> vector<2x16x1xf32>
    %31 = vector.broadcast %30 : vector<2x16x1xf32> to vector<2x16x16xf32>
    %32 = arith.mulf %27, %31 : vector<2x16x16xf32>
    %33 = arith.truncf %32 : vector<2x16x16xf32> to vector<2x16x16xbf16>
    "tpu.trace_start"() <{level = 10 : i32, message = "bqk,bkd->bqd"}> : () -> ()
    %cst_21 = arith.constant dense<0.000000e+00> : vector<2x16x128xf32>
    %34 = tpu.matmul %33, %21, %cst_21 {dimension_numbers = #tpu.dot_dimension_numbers<[2], [1], [1], [2], [0, 0, 0, 1, 1, 2], [0], [0]>} : vector<2x16x16xbf16>, vector<2x16x128xbf16>, vector<2x16x128xf32> -> vector<2x16x128xf32>
    "tpu.trace_stop"() : () -> ()
    %35 = vector.shape_cast %34 : vector<2x16x128xf32> to vector<32x128xf32>
    %36 = arith.truncf %35 : vector<32x128xf32> to vector<32x128xbf16>
    %cst_22 = arith.constant dense<0.000000e+00> : vector<32x128xf32>
    %37 = tpu.matmul %36, %15, %cst_22 {dimension_numbers = #tpu.dot_dimension_numbers<[1], [0], [0], [1], [0, 0, 1, 1], [], []>} : vector<32x128xbf16>, vector<128x128xbf16>, vector<32x128xf32> -> vector<32x128xf32>
    %c0_23 = arith.constant 0 : index
    %c0_24 = arith.constant 0 : index
    %38 = vector.load %arg8[%c0_23, %c0_24] : memref<1x128xf32, #tpu.memory_space<vmem>>, vector<1x128xf32>
    %39 = vector.broadcast %38 : vector<1x128xf32> to vector<32x128xf32>
    %40 = arith.addf %37, %39 : vector<32x128xf32>
    %41 = arith.addf %40, %1 : vector<32x128xf32>
    %c0_25 = arith.constant 0 : index
    %c0_26 = arith.constant 0 : index
    %42 = vector.load %arg9[%c0_25, %c0_26] : memref<1x128xf32, #tpu.memory_space<vmem>>, vector<1x128xf32>
    %c0_27 = arith.constant 0 : index
    %c0_28 = arith.constant 0 : index
    %43 = vector.load %arg10[%c0_27, %c0_28] : memref<1x128xf32, #tpu.memory_space<vmem>>, vector<1x128xf32>
    %cst_29 = arith.constant dense<0.000000e+00> : vector<32xf32>
    %44 = vector.multi_reduction <add>, %41, %cst_29 [1] : vector<32x128xf32> to vector<32xf32>
    %45 = vector.shape_cast %44 : vector<32xf32> to vector<32x1xf32>
    %cst_30 = arith.constant 1.280000e+02 : f32
    %46 = vector.broadcast %cst_30 : f32 to vector<32x1xf32>
    %47 = arith.divf %45, %46 : vector<32x1xf32>
    %48 = vector.broadcast %47 : vector<32x1xf32> to vector<32x128xf32>
    %49 = arith.subf %41, %48 : vector<32x128xf32>
    %50 = arith.mulf %49, %49 : vector<32x128xf32>
    %cst_31 = arith.constant dense<0.000000e+00> : vector<32xf32>
    %51 = vector.multi_reduction <add>, %50, %cst_31 [1] : vector<32x128xf32> to vector<32xf32>
    %52 = vector.shape_cast %51 : vector<32xf32> to vector<32x1xf32>
    %cst_32 = arith.constant 1.280000e+02 : f32
    %53 = vector.broadcast %cst_32 : f32 to vector<32x1xf32>
    %54 = arith.divf %52, %53 : vector<32x1xf32>
    %55 = vector.broadcast %47 : vector<32x1xf32> to vector<32x128xf32>
    %56 = arith.subf %41, %55 : vector<32x128xf32>
    %cst_33 = arith.constant 9.99999974E-6 : f32
    %57 = vector.broadcast %cst_33 : f32 to vector<32x1xf32>
    %58 = arith.addf %54, %57 : vector<32x1xf32>
    %59 = math.rsqrt %58 : vector<32x1xf32>
    %60 = vector.broadcast %59 : vector<32x1xf32> to vector<32x128xf32>
    %61 = arith.mulf %56, %60 : vector<32x128xf32>
    %62 = vector.broadcast %42 : vector<1x128xf32> to vector<32x128xf32>
    %63 = arith.mulf %61, %62 : vector<32x128xf32>
    %64 = vector.broadcast %43 : vector<1x128xf32> to vector<32x128xf32>
    %65 = arith.addf %63, %64 : vector<32x128xf32>
    %66 = arith.truncf %65 : vector<32x128xf32> to vector<32x128xbf16>
    %c0_34 = arith.constant 0 : index
    %c0_35 = arith.constant 0 : index
    %67 = vector.load %arg11[%c0_34, %c0_35] : memref<128x256xbf16, #tpu.memory_space<vmem>>, vector<128x256xbf16>
    %cst_36 = arith.constant dense<0.000000e+00> : vector<32x256xf32>
    %68 = tpu.matmul %66, %67, %cst_36 {dimension_numbers = #tpu.dot_dimension_numbers<[1], [0], [0], [1], [0, 0, 1, 1], [], []>} : vector<32x128xbf16>, vector<128x256xbf16>, vector<32x256xf32> -> vector<32x256xf32>
    %c0_37 = arith.constant 0 : index
    %c0_38 = arith.constant 0 : index
    %69 = vector.load %arg12[%c0_37, %c0_38] : memref<1x256xf32, #tpu.memory_space<vmem>>, vector<1x256xf32>
    %70 = vector.broadcast %69 : vector<1x256xf32> to vector<32x256xf32>
    %71 = arith.addf %68, %70 : vector<32x256xf32>
    %cst_39 = arith.constant 0.000000e+00 : f32
    %72 = vector.broadcast %cst_39 : f32 to vector<32x256xf32>
    %73 = arith.maximumf %71, %72 : vector<32x256xf32>
    %74 = arith.truncf %73 : vector<32x256xf32> to vector<32x256xbf16>
    %c0_40 = arith.constant 0 : index
    %c0_41 = arith.constant 0 : index
    %75 = vector.load %arg13[%c0_40, %c0_41] : memref<256x128xbf16, #tpu.memory_space<vmem>>, vector<256x128xbf16>
    %cst_42 = arith.constant dense<0.000000e+00> : vector<32x128xf32>
    %76 = tpu.matmul %74, %75, %cst_42 {dimension_numbers = #tpu.dot_dimension_numbers<[1], [0], [0], [1], [0, 0, 1, 1], [], []>} : vector<32x256xbf16>, vector<256x128xbf16>, vector<32x128xf32> -> vector<32x128xf32>
    %c0_43 = arith.constant 0 : index
    %c0_44 = arith.constant 0 : index
    %77 = vector.load %arg14[%c0_43, %c0_44] : memref<1x128xf32, #tpu.memory_space<vmem>>, vector<1x128xf32>
    %78 = vector.broadcast %77 : vector<1x128xf32> to vector<32x128xf32>
    %79 = arith.addf %76, %78 : vector<32x128xf32>
    %80 = arith.addf %79, %65 : vector<32x128xf32>
    %c0_45 = arith.constant 0 : index
    %c0_46 = arith.constant 0 : index
    %81 = vector.load %arg15[%c0_45, %c0_46] : memref<1x128xf32, #tpu.memory_space<vmem>>, vector<1x128xf32>
    %c0_47 = arith.constant 0 : index
    %c0_48 = arith.constant 0 : index
    %82 = vector.load %arg16[%c0_47, %c0_48] : memref<1x128xf32, #tpu.memory_space<vmem>>, vector<1x128xf32>
    %cst_49 = arith.constant dense<0.000000e+00> : vector<32xf32>
    %83 = vector.multi_reduction <add>, %80, %cst_49 [1] : vector<32x128xf32> to vector<32xf32>
    %84 = vector.shape_cast %83 : vector<32xf32> to vector<32x1xf32>
    %cst_50 = arith.constant 1.280000e+02 : f32
    %85 = vector.broadcast %cst_50 : f32 to vector<32x1xf32>
    %86 = arith.divf %84, %85 : vector<32x1xf32>
    %87 = vector.broadcast %86 : vector<32x1xf32> to vector<32x128xf32>
    %88 = arith.subf %80, %87 : vector<32x128xf32>
    %89 = arith.mulf %88, %88 : vector<32x128xf32>
    %cst_51 = arith.constant dense<0.000000e+00> : vector<32xf32>
    %90 = vector.multi_reduction <add>, %89, %cst_51 [1] : vector<32x128xf32> to vector<32xf32>
    %91 = vector.shape_cast %90 : vector<32xf32> to vector<32x1xf32>
    %cst_52 = arith.constant 1.280000e+02 : f32
    %92 = vector.broadcast %cst_52 : f32 to vector<32x1xf32>
    %93 = arith.divf %91, %92 : vector<32x1xf32>
    %94 = vector.broadcast %86 : vector<32x1xf32> to vector<32x128xf32>
    %95 = arith.subf %80, %94 : vector<32x128xf32>
    %cst_53 = arith.constant 9.99999974E-6 : f32
    %96 = vector.broadcast %cst_53 : f32 to vector<32x1xf32>
    %97 = arith.addf %93, %96 : vector<32x1xf32>
    %98 = math.rsqrt %97 : vector<32x1xf32>
    %99 = vector.broadcast %98 : vector<32x1xf32> to vector<32x128xf32>
    %100 = arith.mulf %95, %99 : vector<32x128xf32>
    %101 = vector.broadcast %81 : vector<1x128xf32> to vector<32x128xf32>
    %102 = arith.mulf %100, %101 : vector<32x128xf32>
    %103 = vector.broadcast %82 : vector<1x128xf32> to vector<32x128xf32>
    %104 = arith.addf %102, %103 : vector<32x128xf32>
    %105 = vector.shape_cast %104 : vector<32x128xf32> to vector<2x16x128xf32>
    %c0_54 = arith.constant 0 : index
    %c0_55 = arith.constant 0 : index
    %c0_56 = arith.constant 0 : index
    %106 = vector.load %arg17[%c0_54, %c0_55, %c0_56] : memref<2x16x128xf32, #tpu.memory_space<vmem>>, vector<2x16x128xf32>
    tpu.vector_store %arg17[%c0_54, %c0_55, %c0_56], %105 {strides = array<i32>} : memref<2x16x128xf32, #tpu.memory_space<vmem>>, vector<2x16x128xf32>,
    return
  }
  func.func @transform_0(%arg0: i32) -> (i32, i32, i32) {
    %c0_i32 = arith.constant 0 : i32
    %c0_i32_0 = arith.constant 0 : i32
    %c0_i32_1 = arith.constant 0 : i32
    return %arg0, %c0_i32, %c0_i32_0 : i32, i32, i32
  }
  func.func @transform_1(%arg0: i32) -> (i32, i32, i32) {
    %c0_i32 = arith.constant 0 : i32
    %c0_i32_0 = arith.constant 0 : i32
    %c0_i32_1 = arith.constant 0 : i32
    return %arg0, %c0_i32, %c0_i32_0 : i32, i32, i32
  }
  func.func @transform_2(%arg0: i32) -> (i32, i32, i32) {
    %c0_i32 = arith.constant 0 : i32
    %c0_i32_0 = arith.constant 0 : i32
    %c0_i32_1 = arith.constant 0 : i32
    return %arg0, %c0_i32, %c0_i32_0 : i32, i32, i32
  }
  func.func @transform_3(%arg0: i32) -> (i32, i32) {
    %c0_i32 = arith.constant 0 : i32
    %c0_i32_0 = arith.constant 0 : i32
    %c0_i32_1 = arith.constant 0 : i32
    return %c0_i32, %c0_i32_0 : i32, i32
  }
  func.func @transform_4(%arg0: i32) -> (i32, i32) {
    %c0_i32 = arith.constant 0 : i32
    %c0_i32_0 = arith.constant 0 : i32
    %c0_i32_1 = arith.constant 0 : i32
    return %c0_i32, %c0_i32_0 : i32, i32
  }
  func.func @transform_5(%arg0: i32) -> (i32, i32) {
    %c0_i32 = arith.constant 0 : i32
    %c0_i32_0 = arith.constant 0 : i32
    %c0_i32_1 = arith.constant 0 : i32
    return %c0_i32, %c0_i32_0 : i32, i32
  }
  func.func @transform_6(%arg0: i32) -> (i32, i32) {
    %c0_i32 = arith.constant 0 : i32
    %c0_i32_0 = arith.constant 0 : i32
    %c0_i32_1 = arith.constant 0 : i32
    return %c0_i32, %c0_i32_0 : i32, i32
  }
  func.func @transform_7(%arg0: i32) -> (i32, i32) {
    %c0_i32 = arith.constant 0 : i32
    %c0_i32_0 = arith.constant 0 : i32
    %c0_i32_1 = arith.constant 0 : i32
    return %c0_i32, %c0_i32_0 : i32, i32
  }
  func.func @transform_8(%arg0: i32) -> (i32, i32) {
    %c0_i32 = arith.constant 0 : i32
    %c0_i32_0 = arith.constant 0 : i32
    %c0_i32_1 = arith.constant 0 : i32
    return %c0_i32, %c0_i32_0 : i32, i32
  }
  func.func @transform_9(%arg0: i32) -> (i32, i32) {
    %c0_i32 = arith.constant 0 : i32
    %c0_i32_0 = arith.constant 0 : i32
    %c0_i32_1 = arith.constant 0 : i32
    return %c0_i32, %c0_i32_0 : i32, i32
  }
  func.func @transform_10(%arg0: i32) -> (i32, i32) {
    %c0_i32 = arith.constant 0 : i32
    %c0_i32_0 = arith.constant 0 : i32
    %c0_i32_1 = arith.constant 0 : i32
    return %c0_i32, %c0_i32_0 : i32, i32
  }
  func.func @transform_11(%arg0: i32) -> (i32, i32) {
    %c0_i32 = arith.constant 0 : i32
    %c0_i32_0 = arith.constant 0 : i32
    %c0_i32_1 = arith.constant 0 : i32
    return %c0_i32, %c0_i32_0 : i32, i32
  }
  func.func @transform_12(%arg0: i32) -> (i32, i32) {
    %c0_i32 = arith.constant 0 : i32
    %c0_i32_0 = arith.constant 0 : i32
    %c0_i32_1 = arith.constant 0 : i32
    return %c0_i32, %c0_i32_0 : i32, i32
  }
  func.func @transform_13(%arg0: i32) -> (i32, i32) {
    %c0_i32 = arith.constant 0 : i32
    %c0_i32_0 = arith.constant 0 : i32
    %c0_i32_1 = arith.constant 0 : i32
    return %c0_i32, %c0_i32_0 : i32, i32
  }
  func.func @transform_14(%arg0: i32) -> (i32, i32) {
    %c0_i32 = arith.constant 0 : i32
    %c0_i32_0 = arith.constant 0 : i32
    %c0_i32_1 = arith.constant 0 : i32
    return %c0_i32, %c0_i32_0 : i32, i32
  }
  func.func @transform_15(%arg0: i32) -> (i32, i32) {
    %c0_i32 = arith.constant 0 : i32
    %c0_i32_0 = arith.constant 0 : i32
    %c0_i32_1 = arith.constant 0 : i32
    return %c0_i32, %c0_i32_0 : i32, i32
  }
  func.func @transform_16(%arg0: i32) -> (i32, i32, i32) {
    %c0_i32 = arith.constant 0 : i32
    %c0_i32_0 = arith.constant 0 : i32
    %c0_i32_1 = arith.constant 0 : i32
    return %arg0, %c0_i32, %c0_i32_0 : i32, i32, i32
  }
}

</mosaic_0001>

<llo_original>
// kernel: tpu_custom_call.1
$region0: #{tpu_custom_call.1}
  #allocation0 [shape = 'u32[]', space=smem, size = 0x4, offset = 0x4, fixed_abs, tag = 'smem constant byte address 0x4 - core index']
  #allocation1 [shape = 'u32[144,128]{1,0:T(1,128)}', space=vmem, size = 0x12000, scoped, tag = 'internal scratch']
  %s0 = inlined_call_operand.hbm [shape: f32[4,16,128], index: 0, kind: input, shape index: {}]
  %s1 = inlined_call_operand.hbm [shape: f32[4,16,128], index: 1, kind: input, shape index: {}]
  %s2 = inlined_call_operand.hbm [shape: f32[4,16,128], index: 2, kind: input, shape index: {}]
  %s3 = inlined_call_operand.hbm [shape: bf16[128,128], index: 3, kind: input, shape index: {}]
  %s4 = inlined_call_operand.hbm [shape: bf16[128,128], index: 4, kind: input, shape index: {}]
  %s5 = inlined_call_operand.hbm [shape: bf16[128,128], index: 5, kind: input, shape index: {}]
  %s6 = inlined_call_operand.hbm [shape: bf16[128,128], index: 6, kind: input, shape index: {}]
  %s7 = inlined_call_operand.vmem [shape: f32[1,128], index: 7, kind: input, shape index: {}]
  %s8 = inlined_call_operand.vmem [shape: f32[1,128], index: 8, kind: input, shape index: {}]
  %s9 = inlined_call_operand.vmem [shape: f32[1,128], index: 9, kind: input, shape index: {}]
  %s10 = inlined_call_operand.hbm [shape: bf16[128,256], index: 10, kind: input, shape index: {}]
  %s11 = inlined_call_operand.vmem [shape: f32[1,256], index: 11, kind: input, shape index: {}]
  %s12 = inlined_call_operand.hbm [shape: bf16[256,128], index: 12, kind: input, shape index: {}]
  %s13 = inlined_call_operand.vmem [shape: f32[1,128], index: 13, kind: input, shape index: {}]
  %s14 = inlined_call_operand.vmem [shape: f32[1,128], index: 14, kind: input, shape index: {}]
  %s15 = inlined_call_operand.vmem [shape: f32[1,128], index: 15, kind: input, shape index: {}]
  %s16 = inlined_call_operand.hbm [shape: f32[4,16,128], index: 16, kind: output, shape index: {}]
  %s17 = sld [smem:[#allocation0]]
  $region133: #{tpu_custom_call.1} parent=0
    _
  %s19 = ssub.s32 1, %s17
  %s20 = scalar_select 0, %s19, %s17
  $region1: #{tpu_custom_call.1} parent=0
    #allocation2 [shape = 'u8[32768]{0}', space=vmem, size = 0x8000, scoped, tag = 'input window, operand 0']
    #allocation3 [shape = 's32[2]{0}', space=sflag, size = 0x8, scoped, tag = 'scoped memory for tpu_custom_call.1']
    #allocation4 [shape = 's32[2]{0}', space=sflag, size = 0x8, scoped, tag = 'scoped memory for tpu_custom_call.1']
    #allocation5 [shape = 'u8[32768]{0}', space=vmem, size = 0x8000, scoped, tag = 'input window, operand 1']
    #allocation6 [shape = 's32[2]{0}', space=sflag, size = 0x8, scoped, tag = 'scoped memory for tpu_custom_call.1']
    #allocation7 [shape = 'u8[32768]{0}', space=vmem, size = 0x8000, scoped, tag = 'input window, operand 2']
    #allocation8 [shape = 'u8[32768]{0}', space=vmem, size = 0x8000, scoped, tag = 'input window, operand 3, single buffered']
    #allocation9 [shape = 's32[1]{0}', space=sflag, size = 0x4, scoped, tag = 'scoped memory for tpu_custom_call.1']
    #allocation10 [shape = 'u8[32768]{0}', space=vmem, size = 0x8000, scoped, tag = 'input window, operand 4, single buffered']
    #allocation11 [shape = 'u8[32768]{0}', space=vmem, size = 0x8000, scoped, tag = 'input window, operand 5, single buffered']
    #allocation12 [shape = 's32[1]{0}', space=sflag, size = 0x4, scoped, tag = 'scoped memory for tpu_custom_call.1']
    #allocation13 [shape = 'u8[32768]{0}', space=vmem, size = 0x8000, scoped, tag = 'input window, operand 6, single buffered']
    #allocation14 [shape = 'u8[65536]{0}', space=vmem, size = 0x10000, scoped, tag = 'input window, operand 10, single buffered']
    #allocation15 [shape = 's32[1]{0}', space=sflag, size = 0x4, scoped, tag = 'scoped memory for tpu_custom_call.1']
    #allocation16 [shape = 'u8[65536]{0}', space=vmem, size = 0x10000, scoped, tag = 'input window, operand 12, single buffered']
    #allocation17 [shape = 'u8[32768]{0}', space=vmem, size = 0x8000, scoped, tag = 'output window, operand 0']
    %21 = vsyncpa [#allocation3], 0
    %s22 = scalar_lea.sflag [#allocation3], 1
    %23 = vsyncpa %s22, 0
    %24 = vsyncpa [#allocation6], 0
    %s25 = scalar_lea.sflag [#allocation6], 1
    %26 = vsyncpa %s25, 0
    %27 = vsyncpa [#allocation9], 0
    %28 = vsyncpa [#allocation12], 0
    %29 = vsyncpa [#allocation15], 0
    %30 = vsyncpa [#allocation4], 0
    %s31 = scalar_lea.sflag [#allocation4], 1
    %32 = vsyncpa %s31, 0
    loop: start=0, step=1, limit=4
    $region2: #{tpu_custom_call.1} parent=1 // loop_pre_header
      _
    $region3: #{tpu_custom_call.1} parent=1 // loop_header
      %s34 = sphi 0, %s38
      %p35 = scmp.ge.s32.totalorder %s34, 4
      %s44 = sphi 0, %s46
      %s47 = sphi 0, %s44
      %s48 = sphi 0, %s47
      %s64 = sphi 0, %s48
      %s70 = sphi 0, %s72
      %s73 = sphi 0, %s70
      %s74 = sphi 0, %s73
      %s90 = sphi 0, %s74
      %s96 = sphi 0, %s98
      %s99 = sphi 0, %s96
      %s100 = sphi 0, %s99
      %s116 = sphi 0, %s100
      %s120 = sphi 0, %s120
      %s122 = sphi 0, %s120
      %s123 = sphi 0, %s122
      %s137 = sphi 0, %s123
      %s141 = sphi 0, %s141
      %s143 = sphi 0, %s141
      %s144 = sphi 0, %s143
      %s158 = sphi 0, %s144
      %s162 = sphi 0, %s162
      %s164 = sphi 0, %s162
      %s165 = sphi 0, %s164
      %s179 = sphi 0, %s165
      %s183 = sphi 0, %s183
      %s185 = sphi 0, %s183
      %s186 = sphi 0, %s185
      %s200 = sphi 0, %s186
      %s204 = sphi 0, %s204
      %s206 = sphi 0, %s204
      %s207 = sphi 0, %s206
      %s221 = sphi 0, %s207
      %s225 = sphi 0, %s225
      %s227 = sphi 0, %s225
      %s228 = sphi 0, %s227
      %s242 = sphi 0, %s228
      %s246 = sphi 0, %s246
      %s248 = sphi 0, %s246
      %s249 = sphi 0, %s248
      %s263 = sphi 0, %s249
      %s267 = sphi 0, %s267
      %s269 = sphi 0, %s267
      %s270 = sphi 0, %s269
      %s284 = sphi 0, %s270
      %s288 = sphi 0, %s288
      %s290 = sphi 0, %s288
      %s291 = sphi 0, %s290
      %s305 = sphi 0, %s291
      %s309 = sphi 0, %s309
      %s311 = sphi 0, %s309
      %s312 = sphi 0, %s311
      %s326 = sphi 0, %s312
      %s330 = sphi 0, %s330
      %s332 = sphi 0, %s330
      %s333 = sphi 0, %s332
      %s347 = sphi 0, %s333
      %s351 = sphi 0, %s351
      %s353 = sphi 0, %s351
      %s354 = sphi 0, %s353
      %s368 = sphi 0, %s354
      %s372 = sphi 0, %s372
      %s374 = sphi 0, %s372
      %s375 = sphi 0, %s374
      %s389 = sphi 0, %s375
      %s395 = sphi 0, %s397
      %s398 = sphi 0, %s395
      %s399 = sphi 0, %s398
      %s415 = sphi 0, %s399
    $region4: #{tpu_custom_call.1} parent=1 // loop_header_branch
      %37 = sbr.rel (%p35) target = $region8
    $region5: #{tpu_custom_call.1} parent=1 // loop_body
      %s39 = ssub.s32 %s34, 1
      %s40 = ssub.s32 %s34, 2
      %s41 = sadd.s32 %s34, 1
      %s42 = ssub.s32 %s34, %s41
      %p43 = scmp.eq.s32.totalorder %s42, 0
      %s45 = sadd.s32 %s44, 1
      %s46 = scalar_select %p43, %s44, %s45
      %p49 = pneg %p43
      %p50 = scmp.eq.s32.totalorder %s34, 1
      %p51 = por %p49, %p50
      %p52 = scmp.ne.s32.totalorder %s44, %s47
      %p53 = scmp.eq.s32.totalorder %s34, 0
      %p54 = por %p52, %p53
      %p55 = scmp.ne.s32.totalorder %s44, %s47
      %p56 = scmp.eq.s32.totalorder %s39, 1
      %p57 = por %p55, %p56
      %p58 = scmp.ne.s32.totalorder %s47, %s48
      %p59 = scmp.eq.s32.totalorder %s39, 0
      %p60 = por %p58, %p59
      %p61 = scmp.ne.s32.totalorder %s47, %s48
      %p62 = scmp.eq.s32.totalorder %s40, 1
      %p63 = por %p61, %p62
      %p65 = scmp.ne.s32.totalorder %s48, %s64
      %p66 = scmp.eq.s32.totalorder %s40, 0
      %p67 = por %p65, %p66
      %s68 = ssub.s32 %s34, %s41
      %p69 = scmp.eq.s32.totalorder %s68, 0
      %s71 = sadd.s32 %s70, 1
      %s72 = scalar_select %p69, %s70, %s71
      %p75 = pneg %p69
      %p76 = scmp.eq.s32.totalorder %s34, 1
      %p77 = por %p75, %p76
      %p78 = scmp.ne.s32.totalorder %s70, %s73
      %p79 = scmp.eq.s32.totalorder %s34, 0
      %p80 = por %p78, %p79
      %p81 = scmp.ne.s32.totalorder %s70, %s73
      %p82 = scmp.eq.s32.totalorder %s39, 1
      %p83 = por %p81, %p82
      %p84 = scmp.ne.s32.totalorder %s73, %s74
      %p85 = scmp.eq.s32.totalorder %s39, 0
      %p86 = por %p84, %p85
      %p87 = scmp.ne.s32.totalorder %s73, %s74
      %p88 = scmp.eq.s32.totalorder %s40, 1
      %p89 = por %p87, %p88
      %p91 = scmp.ne.s32.totalorder %s74, %s90
      %p92 = scmp.eq.s32.totalorder %s40, 0
      %p93 = por %p91, %p92
      %s94 = ssub.s32 %s34, %s41
      %p95 = scmp.eq.s32.totalorder %s94, 0
      %s97 = sadd.s32 %s96, 1
      %s98 = scalar_select %p95, %s96, %s97
      %p101 = pneg %p95
      %p102 = scmp.eq.s32.totalorder %s34, 1
      %p103 = por %p101, %p102
      %p104 = scmp.ne.s32.totalorder %s96, %s99
      %p105 = scmp.eq.s32.totalorder %s34, 0
      %p106 = por %p104, %p105
      %p107 = scmp.ne.s32.totalorder %s96, %s99
      %p108 = scmp.eq.s32.totalorder %s39, 1
      %p109 = por %p107, %p108
      %p110 = scmp.ne.s32.totalorder %s99, %s100
      %p111 = scmp.eq.s32.totalorder %s39, 0
      %p112 = por %p110, %p111
      %p113 = scmp.ne.s32.totalorder %s99, %s100
      %p114 = scmp.eq.s32.totalorder %s40, 1
      %p115 = por %p113, %p114
      %p117 = scmp.ne.s32.totalorder %s100, %s116
      %p118 = scmp.eq.s32.totalorder %s40, 0
      %p119 = por %p117, %p118
      %s121 = sadd.s32 %s120, 1
      %p124 = scmp.eq.s32.totalorder %s34, 1
      %p125 = scmp.ne.s32.totalorder %s120, %s122
      %p126 = scmp.eq.s32.totalorder %s34, 0
      %p127 = por %p125, %p126
      %p128 = scmp.ne.s32.totalorder %s120, %s122
      %p129 = scmp.eq.s32.totalorder %s39, 1
      %p130 = por %p128, %p129
      %p131 = scmp.ne.s32.totalorder %s122, %s123
      %p132 = scmp.eq.s32.totalorder %s39, 0
      %p133 = por %p131, %p132
      %p134 = scmp.ne.s32.totalorder %s122, %s123
      %p135 = scmp.eq.s32.totalorder %s40, 1
      %p136 = por %p134, %p135
      %p138 = scmp.ne.s32.totalorder %s123, %s137
      %p139 = scmp.eq.s32.totalorder %s40, 0
      %p140 = por %p138, %p139
      %s142 = sadd.s32 %s141, 1
      %p145 = scmp.eq.s32.totalorder %s34, 1
      %p146 = scmp.ne.s32.totalorder %s141, %s143
      %p147 = scmp.eq.s32.totalorder %s34, 0
      %p148 = por %p146, %p147
      %p149 = scmp.ne.s32.totalorder %s141, %s143
      %p150 = scmp.eq.s32.totalorder %s39, 1
      %p151 = por %p149, %p150
      %p152 = scmp.ne.s32.totalorder %s143, %s144
      %p153 = scmp.eq.s32.totalorder %s39, 0
      %p154 = por %p152, %p153
      %p155 = scmp.ne.s32.totalorder %s143, %s144
      %p156 = scmp.eq.s32.totalorder %s40, 1
      %p157 = por %p155, %p156
      %p159 = scmp.ne.s32.totalorder %s144, %s158
      %p160 = scmp.eq.s32.totalorder %s40, 0
      %p161 = por %p159, %p160
      %s163 = sadd.s32 %s162, 1
      %p166 = scmp.eq.s32.totalorder %s34, 1
      %p167 = scmp.ne.s32.totalorder %s162, %s164
      %p168 = scmp.eq.s32.totalorder %s34, 0
      %p169 = por %p167, %p168
      %p170 = scmp.ne.s32.totalorder %s162, %s164
      %p171 = scmp.eq.s32.totalorder %s39, 1
      %p172 = por %p170, %p171
      %p173 = scmp.ne.s32.totalorder %s164, %s165
      %p174 = scmp.eq.s32.totalorder %s39, 0
      %p175 = por %p173, %p174
      %p176 = scmp.ne.s32.totalorder %s164, %s165
      %p177 = scmp.eq.s32.totalorder %s40, 1
      %p178 = por %p176, %p177
      %p180 = scmp.ne.s32.totalorder %s165, %s179
      %p181 = scmp.eq.s32.totalorder %s40, 0
      %p182 = por %p180, %p181
      %s184 = sadd.s32 %s183, 1
      %p187 = scmp.eq.s32.totalorder %s34, 1
      %p188 = scmp.ne.s32.totalorder %s183, %s185
      %p189 = scmp.eq.s32.totalorder %s34, 0
      %p190 = por %p188, %p189
      %p191 = scmp.ne.s32.totalorder %s183, %s185
      %p192 = scmp.eq.s32.totalorder %s39, 1
      %p193 = por %p191, %p192
      %p194 = scmp.ne.s32.totalorder %s185, %s186
      %p195 = scmp.eq.s32.totalorder %s39, 0
      %p196 = por %p194, %p195
      %p197 = scmp.ne.s32.totalorder %s185, %s186
      %p198 = scmp.eq.s32.totalorder %s40, 1
      %p199 = por %p197, %p198
      %p201 = scmp.ne.s32.totalorder %s186, %s200
      %p202 = scmp.eq.s32.totalorder %s40, 0
      %p203 = por %p201, %p202
      %s205 = sadd.s32 %s204, 1
      %p208 = scmp.eq.s32.totalorder %s34, 1
      %p209 = scmp.ne.s32.totalorder %s204, %s206
      %p210 = scmp.eq.s32.totalorder %s34, 0
      %p211 = por %p209, %p210
      %p212 = scmp.ne.s32.totalorder %s204, %s206
      %p213 = scmp.eq.s32.totalorder %s39, 1
      %p214 = por %p212, %p213
      %p215 = scmp.ne.s32.totalorder %s206, %s207
      %p216 = scmp.eq.s32.totalorder %s39, 0
      %p217 = por %p215, %p216
      %p218 = scmp.ne.s32.totalorder %s206, %s207
      %p219 = scmp.eq.s32.totalorder %s40, 1
      %p220 = por %p218, %p219
      %p222 = scmp.ne.s32.totalorder %s207, %s221
      %p223 = scmp.eq.s32.totalorder %s40, 0
      %p224 = por %p222, %p223
      %s226 = sadd.s32 %s225, 1
      %p229 = scmp.eq.s32.totalorder %s34, 1
      %p230 = scmp.ne.s32.totalorder %s225, %s227
      %p231 = scmp.eq.s32.totalorder %s34, 0
      %p232 = por %p230, %p231
      %p233 = scmp.ne.s32.totalorder %s225, %s227
      %p234 = scmp.eq.s32.totalorder %s39, 1
      %p235 = por %p233, %p234
      %p236 = scmp.ne.s32.totalorder %s227, %s228
      %p237 = scmp.eq.s32.totalorder %s39, 0
      %p238 = por %p236, %p237
      %p239 = scmp.ne.s32.totalorder %s227, %s228
      %p240 = scmp.eq.s32.totalorder %s40, 1
      %p241 = por %p239, %p240
      %p243 = scmp.ne.s32.totalorder %s228, %s242
      %p244 = scmp.eq.s32.totalorder %s40, 0
      %p245 = por %p243, %p244
      %s247 = sadd.s32 %s246, 1
      %p250 = scmp.eq.s32.totalorder %s34, 1
      %p251 = scmp.ne.s32.totalorder %s246, %s248
      %p252 = scmp.eq.s32.totalorder %s34, 0
      %p253 = por %p251, %p252
      %p254 = scmp.ne.s32.totalorder %s246, %s248
      %p255 = scmp.eq.s32.totalorder %s39, 1
      %p256 = por %p254, %p255
      %p257 = scmp.ne.s32.totalorder %s248, %s249
      %p258 = scmp.eq.s32.totalorder %s39, 0
      %p259 = por %p257, %p258
      %p260 = scmp.ne.s32.totalorder %s248, %s249
      %p261 = scmp.eq.s32.totalorder %s40, 1
      %p262 = por %p260, %p261
      %p264 = scmp.ne.s32.totalorder %s249, %s263
      %p265 = scmp.eq.s32.totalorder %s40, 0
      %p266 = por %p264, %p265
      %s268 = sadd.s32 %s267, 1
      %p271 = scmp.eq.s32.totalorder %s34, 1
      %p272 = scmp.ne.s32.totalorder %s267, %s269
      %p273 = scmp.eq.s32.totalorder %s34, 0
      %p274 = por %p272, %p273
      %p275 = scmp.ne.s32.totalorder %s267, %s269
      %p276 = scmp.eq.s32.totalorder %s39, 1
      %p277 = por %p275, %p276
      %p278 = scmp.ne.s32.totalorder %s269, %s270
      %p279 = scmp.eq.s32.totalorder %s39, 0
      %p280 = por %p278, %p279
      %p281 = scmp.ne.s32.totalorder %s269, %s270
      %p282 = scmp.eq.s32.totalorder %s40, 1
      %p283 = por %p281, %p282
      %p285 = scmp.ne.s32.totalorder %s270, %s284
      %p286 = scmp.eq.s32.totalorder %s40, 0
      %p287 = por %p285, %p286
      %s289 = sadd.s32 %s288, 1
      %p292 = scmp.eq.s32.totalorder %s34, 1
      %p293 = scmp.ne.s32.totalorder %s288, %s290
      %p294 = scmp.eq.s32.totalorder %s34, 0
      %p295 = por %p293, %p294
      %p296 = scmp.ne.s32.totalorder %s288, %s290
      %p297 = scmp.eq.s32.totalorder %s39, 1
      %p298 = por %p296, %p297
      %p299 = scmp.ne.s32.totalorder %s290, %s291
      %p300 = scmp.eq.s32.totalorder %s39, 0
      %p301 = por %p299, %p300
      %p302 = scmp.ne.s32.totalorder %s290, %s291
      %p303 = scmp.eq.s32.totalorder %s40, 1
      %p304 = por %p302, %p303
      %p306 = scmp.ne.s32.totalorder %s291, %s305
      %p307 = scmp.eq.s32.totalorder %s40, 0
      %p308 = por %p306, %p307
      %s310 = sadd.s32 %s309, 1
      %p313 = scmp.eq.s32.totalorder %s34, 1
      %p314 = scmp.ne.s32.totalorder %s309, %s311
      %p315 = scmp.eq.s32.totalorder %s34, 0
      %p316 = por %p314, %p315
      %p317 = scmp.ne.s32.totalorder %s309, %s311
      %p318 = scmp.eq.s32.totalorder %s39, 1
      %p319 = por %p317, %p318
      %p320 = scmp.ne.s32.totalorder %s311, %s312
      %p321 = scmp.eq.s32.totalorder %s39, 0
      %p322 = por %p320, %p321
      %p323 = scmp.ne.s32.totalorder %s311, %s312
      %p324 = scmp.eq.s32.totalorder %s40, 1
      %p325 = por %p323, %p324
      %p327 = scmp.ne.s32.totalorder %s312, %s326
      %p328 = scmp.eq.s32.totalorder %s40, 0
      %p329 = por %p327, %p328
      %s331 = sadd.s32 %s330, 1
      %p334 = scmp.eq.s32.totalorder %s34, 1
      %p335 = scmp.ne.s32.totalorder %s330, %s332
      %p336 = scmp.eq.s32.totalorder %s34, 0
      %p337 = por %p335, %p336
      %p338 = scmp.ne.s32.totalorder %s330, %s332
      %p339 = scmp.eq.s32.totalorder %s39, 1
      %p340 = por %p338, %p339
      %p341 = scmp.ne.s32.totalorder %s332, %s333
      %p342 = scmp.eq.s32.totalorder %s39, 0
      %p343 = por %p341, %p342
      %p344 = scmp.ne.s32.totalorder %s332, %s333
      %p345 = scmp.eq.s32.totalorder %s40, 1
      %p346 = por %p344, %p345
      %p348 = scmp.ne.s32.totalorder %s333, %s347
      %p349 = scmp.eq.s32.totalorder %s40, 0
      %p350 = por %p348, %p349
      %s352 = sadd.s32 %s351, 1
      %p355 = scmp.eq.s32.totalorder %s34, 1
      %p356 = scmp.ne.s32.totalorder %s351, %s353
      %p357 = scmp.eq.s32.totalorder %s34, 0
      %p358 = por %p356, %p357
      %p359 = scmp.ne.s32.totalorder %s351, %s353
      %p360 = scmp.eq.s32.totalorder %s39, 1
      %p361 = por %p359, %p360
      %p362 = scmp.ne.s32.totalorder %s353, %s354
      %p363 = scmp.eq.s32.totalorder %s39, 0
      %p364 = por %p362, %p363
      %p365 = scmp.ne.s32.totalorder %s353, %s354
      %p366 = scmp.eq.s32.totalorder %s40, 1
      %p367 = por %p365, %p366
      %p369 = scmp.ne.s32.totalorder %s354, %s368
      %p370 = scmp.eq.s32.totalorder %s40, 0
      %p371 = por %p369, %p370
      %s373 = sadd.s32 %s372, 1
      %p376 = scmp.eq.s32.totalorder %s34, 1
      %p377 = scmp.ne.s32.totalorder %s372, %s374
      %p378 = scmp.eq.s32.totalorder %s34, 0
      %p379 = por %p377, %p378
      %p380 = scmp.ne.s32.totalorder %s372, %s374
      %p381 = scmp.eq.s32.totalorder %s39, 1
      %p382 = por %p380, %p381
      %p383 = scmp.ne.s32.totalorder %s374, %s375
      %p384 = scmp.eq.s32.totalorder %s39, 0
      %p385 = por %p383, %p384
      %p386 = scmp.ne.s32.totalorder %s374, %s375
      %p387 = scmp.eq.s32.totalorder %s40, 1
      %p388 = por %p386, %p387
      %p390 = scmp.ne.s32.totalorder %s375, %s389
      %p391 = scmp.eq.s32.totalorder %s40, 0
      %p392 = por %p390, %p391
      %s393 = ssub.s32 %s34, %s41
      %p394 = scmp.eq.s32.totalorder %s393, 0
      %s396 = sadd.s32 %s395, 1
      %s397 = scalar_select %p394, %s395, %s396
      %p400 = pneg %p394
      %p401 = scmp.eq.s32.totalorder %s34, 1
      %p402 = por %p400, %p401
      %p403 = scmp.ne.s32.totalorder %s395, %s398
      %p404 = scmp.eq.s32.totalorder %s34, 0
      %p405 = por %p403, %p404
      %p406 = scmp.ne.s32.totalorder %s395, %s398
      %p407 = scmp.eq.s32.totalorder %s39, 1
      %p408 = por %p406, %p407
      %p409 = scmp.ne.s32.totalorder %s398, %s399
      %p410 = scmp.eq.s32.totalorder %s39, 0
      %p411 = por %p409, %p410
      %p412 = scmp.ne.s32.totalorder %s398, %s399
      %p413 = scmp.eq.s32.totalorder %s40, 1
      %p414 = por %p412, %p413
      %p416 = scmp.ne.s32.totalorder %s399, %s415
      %p417 = scmp.eq.s32.totalorder %s40, 0
      %p418 = por %p416, %p417
      %p419 = scmp.le.s32.totalorder 1, %s34
      %p420 = scmp.lt.s32.totalorder %s34, 3
      %p421 = pnand %p419, %p420
      %p422 = pneg %p421
      // Predicated region
      $region9: #{tpu_custom_call.1} parent=5 // pred_check
        _
      $region10: #{tpu_custom_call.1} parent=5 // pred_check_branch
        %424 = sbr.rel (%p421) target = $region12
      $region11: #{tpu_custom_call.1} parent=5 // pred_region
        %s425 = ssub.s32 %s34, 1
        // Predicated region
        $region13: #{tpu_custom_call.1} parent=11 // pred_check
          %p426 = pneg %p133
        $region14: #{tpu_custom_call.1} parent=11 // pred_check_branch
          %428 = sbr.rel (%p426) target = $region16
        $region15: #{tpu_custom_call.1} parent=11 // pred_region
          %s430 = ssub.s32 1024, 1024
          %431 = vsyncadd [#allocation9], %s430
          %s432 = sshll.u32 [#allocation8], 4
          %s433 = int_to_ptr.vmem [resolvable:$true] %s432
          %438 = dma.hbm_to_vmem [thread:$0]  %s3, 1024, %s433, [#allocation9], 64, 64, 4
        $region16: #{tpu_custom_call.1} parent=11 // pred_fallthru
          _
        // Predicated region
        $region17: #{tpu_custom_call.1} parent=11 // pred_check
          %p439 = pneg %p154
        $region18: #{tpu_custom_call.1} parent=11 // pred_check_branch
          %441 = sbr.rel (%p439) target = $region20
        $region19: #{tpu_custom_call.1} parent=11 // pred_region
          %s443 = ssub.s32 1024, 1024
          %444 = vsyncadd [#allocation9], %s443
          %s445 = sshll.u32 [#allocation10], 4
          %s446 = int_to_ptr.vmem [resolvable:$true] %s445
          %451 = dma.hbm_to_vmem [thread:$0]  %s4, 1024, %s446, [#allocation9], 64, 64, 4
        $region20: #{tpu_custom_call.1} parent=11 // pred_fallthru
          _
        // Predicated region
        $region21: #{tpu_custom_call.1} parent=11 // pred_check
          %p452 = pneg %p175
        $region22: #{tpu_custom_call.1} parent=11 // pred_check_branch
          %454 = sbr.rel (%p452) target = $region24
        $region23: #{tpu_custom_call.1} parent=11 // pred_region
          %s456 = ssub.s32 1024, 1024
          %457 = vsyncadd [#allocation12], %s456
          %s458 = sshll.u32 [#allocation11], 4
          %s459 = int_to_ptr.vmem [resolvable:$true] %s458
          %464 = dma.hbm_to_vmem [thread:$0]  %s5, 1024, %s459, [#allocation12], 64, 64, 4
        $region24: #{tpu_custom_call.1} parent=11 // pred_fallthru
          _
        // Predicated region
        $region25: #{tpu_custom_call.1} parent=11 // pred_check
          %p465 = pneg %p196
        $region26: #{tpu_custom_call.1} parent=11 // pred_check_branch
          %467 = sbr.rel (%p465) target = $region28
        $region27: #{tpu_custom_call.1} parent=11 // pred_region
          %s469 = ssub.s32 1024, 1024
          %470 = vsyncadd [#allocation12], %s469
          %s471 = sshll.u32 [#allocation13], 4
          %s472 = int_to_ptr.vmem [resolvable:$true] %s471
          %477 = dma.hbm_to_vmem [thread:$0]  %s6, 1024, %s472, [#allocation12], 64, 64, 4
        $region28: #{tpu_custom_call.1} parent=11 // pred_fallthru
          _
        // Predicated region
        $region29: #{tpu_custom_call.1} parent=11 // pred_check
          %p478 = pneg %p217
        $region30: #{tpu_custom_call.1} parent=11 // pred_check_branch
          %480 = sbr.rel (%p478) target = $region32
        $region31: #{tpu_custom_call.1} parent=11 // pred_region
          _
        $region32: #{tpu_custom_call.1} parent=11 // pred_fallthru
          _
        // Predicated region
        $region33: #{tpu_custom_call.1} parent=11 // pred_check
          %p481 = pneg %p238
        $region34: #{tpu_custom_call.1} parent=11 // pred_check_branch
          %483 = sbr.rel (%p481) target = $region36
        $region35: #{tpu_custom_call.1} parent=11 // pred_region
          _
        $region36: #{tpu_custom_call.1} parent=11 // pred_fallthru
          _
        // Predicated region
        $region37: #{tpu_custom_call.1} parent=11 // pred_check
          %p484 = pneg %p259
        $region38: #{tpu_custom_call.1} parent=11 // pred_check_branch
          %486 = sbr.rel (%p484) target = $region40
        $region39: #{tpu_custom_call.1} parent=11 // pred_region
          _
        $region40: #{tpu_custom_call.1} parent=11 // pred_fallthru
          _
        // Predicated region
        $region41: #{tpu_custom_call.1} parent=11 // pred_check
          %p487 = pneg %p280
        $region42: #{tpu_custom_call.1} parent=11 // pred_check_branch
          %489 = sbr.rel (%p487) target = $region44
        $region43: #{tpu_custom_call.1} parent=11 // pred_region
          %s491 = ssub.s32 2048, 2048
          %492 = vsyncadd [#allocation15], %s491
          %s493 = sshll.u32 [#allocation14], 4
          %s494 = int_to_ptr.vmem [resolvable:$true] %s493
          %499 = dma.hbm_to_vmem [thread:$0]  %s10, 2048, %s494, [#allocation15], 128, 128, 8
        $region44: #{tpu_custom_call.1} parent=11 // pred_fallthru
          _
        // Predicated region
        $region45: #{tpu_custom_call.1} parent=11 // pred_check
          %p500 = pneg %p301
        $region46: #{tpu_custom_call.1} parent=11 // pred_check_branch
          %502 = sbr.rel (%p500) target = $region48
        $region47: #{tpu_custom_call.1} parent=11 // pred_region
          _
        $region48: #{tpu_custom_call.1} parent=11 // pred_fallthru
          _
        // Predicated region
        $region49: #{tpu_custom_call.1} parent=11 // pred_check
          %p503 = pneg %p322
        $region50: #{tpu_custom_call.1} parent=11 // pred_check_branch
          %505 = sbr.rel (%p503) target = $region52
        $region51: #{tpu_custom_call.1} parent=11 // pred_region
          %s507 = ssub.s32 2048, 2048
          %508 = vsyncadd [#allocation15], %s507
          %s509 = sshll.u32 [#allocation16], 4
          %s510 = int_to_ptr.vmem [resolvable:$true] %s509
          %515 = dma.hbm_to_vmem [thread:$0]  %s12, 2048, %s510, [#allocation15], 64, 64, 4
        $region52: #{tpu_custom_call.1} parent=11 // pred_fallthru
          _
        // Predicated region
        $region53: #{tpu_custom_call.1} parent=11 // pred_check
          %p516 = pneg %p343
        $region54: #{tpu_custom_call.1} parent=11 // pred_check_branch
          %518 = sbr.rel (%p516) target = $region56
        $region55: #{tpu_custom_call.1} parent=11 // pred_region
          _
        $region56: #{tpu_custom_call.1} parent=11 // pred_fallthru
          _
        // Predicated region
        $region57: #{tpu_custom_call.1} parent=11 // pred_check
          %p519 = pneg %p364
        $region58: #{tpu_custom_call.1} parent=11 // pred_check_branch
          %521 = sbr.rel (%p519) target = $region60
        $region59: #{tpu_custom_call.1} parent=11 // pred_region
          _
        $region60: #{tpu_custom_call.1} parent=11 // pred_fallthru
          _
        // Predicated region
        $region61: #{tpu_custom_call.1} parent=11 // pred_check
          %p522 = pneg %p385
        $region62: #{tpu_custom_call.1} parent=11 // pred_check_branch
          %524 = sbr.rel (%p522) target = $region64
        $region63: #{tpu_custom_call.1} parent=11 // pred_region
          _
        $region64: #{tpu_custom_call.1} parent=11 // pred_fallthru
          _
      $region12: #{tpu_custom_call.1} parent=5 // pred_fallthru
        _
      %p525 = scmp.lt.s32.totalorder %s34, 2
      // Predicated region
      $region65: #{tpu_custom_call.1} parent=5 // pred_check
        %p526 = pneg %p525
      $region66: #{tpu_custom_call.1} parent=5 // pred_check_branch
        %528 = sbr.rel (%p526) target = $region68
      $region67: #{tpu_custom_call.1} parent=5 // pred_region
        // Predicated region
        $region69: #{tpu_custom_call.1} parent=67 // pred_check
          %p529 = pneg %p54
        $region70: #{tpu_custom_call.1} parent=67 // pred_check_branch
          %531 = sbr.rel (%p529) target = $region72
        $region71: #{tpu_custom_call.1} parent=67 // pred_region
          %s532 = sand.u32 %s44, 1
          %s533 = scalar_lea.sflag [#allocation3], %s532
          %s534 = sand.u32 %s44, 1
          %s535 = smul.addr %s534, 32
          %s536 = scalar_lea.vmem [#allocation2], %s535
          %s537 = smul.u32 2, %s34
          %s539 = ssub.s32 512, 512
          %540 = vsyncadd %s533, %s539
          %s541 = smul.addr %s537, 2
          %s542 = smul.addr %s541, 128
          %s543 = scalar_lea.hbm %s0, %s542
          %s544 = sshll.u32 %s536, 4
          %s545 = int_to_ptr.vmem [resolvable:$true] %s544
          %550 = dma.hbm_to_vmem [thread:$0]  %s543, 512, %s545, %s533, 128, 128, 8
        $region72: #{tpu_custom_call.1} parent=67 // pred_fallthru
          _
        // Predicated region
        $region73: #{tpu_custom_call.1} parent=67 // pred_check
          %p551 = pneg %p80
        $region74: #{tpu_custom_call.1} parent=67 // pred_check_branch
          %553 = sbr.rel (%p551) target = $region76
        $region75: #{tpu_custom_call.1} parent=67 // pred_region
          %s554 = sand.u32 %s34, 1
          %s555 = scalar_lea.sflag [#allocation6], %s554
          %s556 = sand.u32 %s70, 1
          %s557 = smul.addr %s556, 32
          %s558 = scalar_lea.vmem [#allocation5], %s557
          %s559 = smul.u32 2, %s34
          %s561 = ssub.s32 512, 512
          %562 = vsyncadd %s555, %s561
          %s563 = smul.addr %s559, 2
          %s564 = smul.addr %s563, 128
          %s565 = scalar_lea.hbm %s1, %s564
          %s566 = sshll.u32 %s558, 4
          %s567 = int_to_ptr.vmem [resolvable:$true] %s566
          %572 = dma.hbm_to_vmem [thread:$0]  %s565, 512, %s567, %s555, 128, 128, 8
        $region76: #{tpu_custom_call.1} parent=67 // pred_fallthru
          _
        // Predicated region
        $region77: #{tpu_custom_call.1} parent=67 // pred_check
          %p573 = pneg %p106
        $region78: #{tpu_custom_call.1} parent=67 // pred_check_branch
          %575 = sbr.rel (%p573) target = $region80
        $region79: #{tpu_custom_call.1} parent=67 // pred_region
          %s576 = sand.u32 %s34, 1
          %s577 = scalar_lea.sflag [#allocation6], %s576
          %s578 = sand.u32 %s96, 1
          %s579 = smul.addr %s578, 32
          %s580 = scalar_lea.vmem [#allocation7], %s579
          %s581 = smul.u32 2, %s34
          %s583 = ssub.s32 512, 512
          %584 = vsyncadd %s577, %s583
          %s585 = smul.addr %s581, 2
          %s586 = smul.addr %s585, 128
          %s587 = scalar_lea.hbm %s2, %s586
          %s588 = sshll.u32 %s580, 4
          %s589 = int_to_ptr.vmem [resolvable:$true] %s588
          %594 = dma.hbm_to_vmem [thread:$0]  %s587, 512, %s589, %s577, 128, 128, 8
        $region80: #{tpu_custom_call.1} parent=67 // pred_fallthru
          _
      $region68: #{tpu_custom_call.1} parent=5 // pred_fallthru
        _
      %p595 = scmp.le.s32.totalorder 1, %s34
      %p596 = scmp.lt.s32.totalorder %s34, 3
      %p597 = pnand %p595, %p596
      %p598 = pneg %p597
      // Predicated region
      $region81: #{tpu_custom_call.1} parent=5 // pred_check
        _
      $region82: #{tpu_custom_call.1} parent=5 // pred_check_branch
        %600 = sbr.rel (%p597) target = $region84
      $region83: #{tpu_custom_call.1} parent=5 // pred_region
        %s601 = ssub.s32 %s34, 1
        %s602 = sand.u32 %s47, 1
        %s603 = scalar_lea.sflag [#allocation3], %s602
        %s604 = sand.u32 %s47, 1
        %s605 = smul.addr %s604, 32
        %s606 = scalar_lea.vmem [#allocation2], %s605
        // Predicated region
        $region85: #{tpu_custom_call.1} parent=83 // pred_check
          %p607 = pneg %p60
        $region86: #{tpu_custom_call.1} parent=83 // pred_check_branch
          %609 = sbr.rel (%p607) target = $region88
        $region87: #{tpu_custom_call.1} parent=83 // pred_region
          %610 = dma.done %s603, 512
        $region88: #{tpu_custom_call.1} parent=83 // pred_fallthru
          _
        %s611 = sand.u32 %s39, 1
        %s612 = scalar_lea.sflag [#allocation6], %s611
        %s613 = sand.u32 %s73, 1
        %s614 = smul.addr %s613, 32
        %s615 = scalar_lea.vmem [#allocation5], %s614
        // Predicated region
        $region89: #{tpu_custom_call.1} parent=83 // pred_check
          %p616 = pneg %p86
        $region90: #{tpu_custom_call.1} parent=83 // pred_check_branch
          %618 = sbr.rel (%p616) target = $region92
        $region91: #{tpu_custom_call.1} parent=83 // pred_region
          %619 = dma.done %s612, 512
        $region92: #{tpu_custom_call.1} parent=83 // pred_fallthru
          _
        %s620 = sand.u32 %s39, 1
        %s621 = scalar_lea.sflag [#allocation6], %s620
        %s622 = sand.u32 %s99, 1
        %s623 = smul.addr %s622, 32
        %s624 = scalar_lea.vmem [#allocation7], %s623
        // Predicated region
        $region93: #{tpu_custom_call.1} parent=83 // pred_check
          %p625 = pneg %p112
        $region94: #{tpu_custom_call.1} parent=83 // pred_check_branch
          %627 = sbr.rel (%p625) target = $region96
        $region95: #{tpu_custom_call.1} parent=83 // pred_region
          %628 = dma.done %s621, 512
        $region96: #{tpu_custom_call.1} parent=83 // pred_fallthru
          _
        // Predicated region
        $region97: #{tpu_custom_call.1} parent=83 // pred_check
          %p629 = pneg %p133
        $region98: #{tpu_custom_call.1} parent=83 // pred_check_branch
          %631 = sbr.rel (%p629) target = $region100
        $region99: #{tpu_custom_call.1} parent=83 // pred_region
          %632 = dma.done [#allocation9], 1024
        $region100: #{tpu_custom_call.1} parent=83 // pred_fallthru
          _
        // Predicated region
        $region101: #{tpu_custom_call.1} parent=83 // pred_check
          %p633 = pneg %p154
        $region102: #{tpu_custom_call.1} parent=83 // pred_check_branch
          %635 = sbr.rel (%p633) target = $region104
        $region103: #{tpu_custom_call.1} parent=83 // pred_region
          %636 = dma.done [#allocation9], 1024
        $region104: #{tpu_custom_call.1} parent=83 // pred_fallthru
          _
        // Predicated region
        $region105: #{tpu_custom_call.1} parent=83 // pred_check
          %p637 = pneg %p175
        $region106: #{tpu_custom_call.1} parent=83 // pred_check_branch
          %639 = sbr.rel (%p637) target = $region108
        $region107: #{tpu_custom_call.1} parent=83 // pred_region
          %640 = dma.done [#allocation12], 1024
        $region108: #{tpu_custom_call.1} parent=83 // pred_fallthru
          _
        // Predicated region
        $region109: #{tpu_custom_call.1} parent=83 // pred_check
          %p641 = pneg %p196
        $region110: #{tpu_custom_call.1} parent=83 // pred_check_branch
          %643 = sbr.rel (%p641) target = $region112
        $region111: #{tpu_custom_call.1} parent=83 // pred_region
          %644 = dma.done [#allocation12], 1024
        $region112: #{tpu_custom_call.1} parent=83 // pred_fallthru
          _
        // Predicated region
        $region113: #{tpu_custom_call.1} parent=83 // pred_check
          %p645 = pneg %p280
        $region114: #{tpu_custom_call.1} parent=83 // pred_check_branch
          %647 = sbr.rel (%p645) target = $region116
        $region115: #{tpu_custom_call.1} parent=83 // pred_region
          %648 = dma.done [#allocation15], 2048
        $region116: #{tpu_custom_call.1} parent=83 // pred_fallthru
          _
        // Predicated region
        $region117: #{tpu_custom_call.1} parent=83 // pred_check
          %p649 = pneg %p322
        $region118: #{tpu_custom_call.1} parent=83 // pred_check_branch
          %651 = sbr.rel (%p649) target = $region120
        $region119: #{tpu_custom_call.1} parent=83 // pred_region
          %652 = dma.done [#allocation15], 2048
        $region120: #{tpu_custom_call.1} parent=83 // pred_fallthru
          _
        %s653 = sand.u32 %s47, 1
        %s654 = scalar_lea.sflag [#allocation3], %s653
        %s655 = sand.u32 %s47, 1
        %s656 = smul.addr %s655, 32
        %s657 = scalar_lea.vmem [#allocation2], %s656
        %p658 = pneg %p60
        %p659 = pneg %p57
        %s660 = sand.u32 %s39, 1
        %s661 = scalar_lea.sflag [#allocation6], %s660
        %s662 = sand.u32 %s73, 1
        %s663 = smul.addr %s662, 32
        %s664 = scalar_lea.vmem [#allocation5], %s663
        %p665 = pneg %p86
        %p666 = pneg %p83
        %s667 = sand.u32 %s39, 1
        %s668 = scalar_lea.sflag [#allocation6], %s667
        %s669 = sand.u32 %s99, 1
        %s670 = smul.addr %s669, 32
        %s671 = scalar_lea.vmem [#allocation7], %s670
        %p672 = pneg %p112
        %p673 = pneg %p109
        %p674 = pneg %p133
        %p675 = pneg %p130
        %p676 = pneg %p154
        %p677 = pneg %p151
        %p678 = pneg %p175
        %p679 = pneg %p172
        %p680 = pneg %p196
        %p681 = pneg %p193
        %p682 = pneg %p217
        %p683 = pneg %p214
        %p684 = pneg %p238
        %p685 = pneg %p235
        %p686 = pneg %p259
        %p687 = pneg %p256
        %p688 = pneg %p280
        %p689 = pneg %p277
        %p690 = pneg %p301
        %p691 = pneg %p298
        %p692 = pneg %p322
        %p693 = pneg %p319
        %p694 = pneg %p343
        %p695 = pneg %p340
        %p696 = pneg %p364
        %p697 = pneg %p361
        %p698 = pneg %p385
        %p699 = pneg %p382
        %p700 = pneg %p411
        %p701 = pneg %p408
        %s702 = sand.u32 %s398, 1
        %s703 = scalar_lea.sflag [#allocation4], %s702
        %s704 = sand.u32 %s398, 1
        %s705 = smul.addr %s704, 32
        %s706 = scalar_lea.vmem [#allocation17], %s705
        %s707 = smul.u32 2, %s39
        %s708 = smul.u32 2, %s39
        %s709 = smul.u32 2, %s39
        %s710 = smul.u32 2, %s39
        %v712 = vld [vmem:[%s624] sm:$0xff]
        %v713 = vld [vmem:[%s624 + $0x8] sm:$0xff]
        %v714 = vld [vmem:[%s624 + $0x10] sm:$0xff]
        %v715 = vld [vmem:[%s624 + $0x18] sm:$0xff]
        %v716 = vld [vmem:[%s606] sm:$0xff]
        %v717 = vld [vmem:[%s606 + $0x8] sm:$0xff]
        %v718 = vld [vmem:[%s606 + $0x10] sm:$0xff]
        %v719 = vld [vmem:[%s606 + $0x18] sm:$0xff]
        %v720 = vpack.c.bf16 %v717, %v716
        %v721 = vpack.c.bf16 %v719, %v718
        %v722 = vld [vmem:[%s615] sm:$0xff]
        %v723 = vld [vmem:[%s615 + $0x8] sm:$0xff]
        %v724 = vld [vmem:[%s615 + $0x10] sm:$0xff]
        %v725 = vld [vmem:[%s615 + $0x18] sm:$0xff]
        %v726 = vpack.c.bf16 %v723, %v722
        %v727 = vpack.c.bf16 %v725, %v724
        %v728 = vpack.c.bf16 %v713, %v712
        %v729 = vpack.c.bf16 %v715, %v714
        %v730 = vld [vmem:[#allocation8] sm:$0xf]
        %v731 = vld [vmem:[#allocation8 + $0x4] sm:$0xf]
        %v732 = vld [vmem:[#allocation8 + $0x8] sm:$0xf]
        %v733 = vld [vmem:[#allocation8 + $0xc] sm:$0xf]
        %v734 = vld [vmem:[#allocation8 + $0x10] sm:$0xf]
        %v735 = vld [vmem:[#allocation8 + $0x14] sm:$0xf]
        %v736 = vld [vmem:[#allocation8 + $0x18] sm:$0xf]
        %v737 = vld [vmem:[#allocation8 + $0x1c] sm:$0xf]
        %v738 = vld [vmem:[#allocation8 + $0x20] sm:$0xf]
        %v739 = vld [vmem:[#allocation8 + $0x24] sm:$0xf]
        %v740 = vld [vmem:[#allocation8 + $0x28] sm:$0xf]
        %v741 = vld [vmem:[#allocation8 + $0x2c] sm:$0xf]
        %v742 = vld [vmem:[#allocation8 + $0x30] sm:$0xf]
        %v743 = vld [vmem:[#allocation8 + $0x34] sm:$0xf]
        %v744 = vld [vmem:[#allocation8 + $0x38] sm:$0xf]
        %v745 = vld [vmem:[#allocation8 + $0x3c] sm:$0xf]
        %v762 = vunpack.c.l.b16 %v730
        %v763 = vunpack.c.l.b16 %v731
        %v764 = vunpack.c.l.b16 %v732
        %v765 = vunpack.c.l.b16 %v733
        %v766 = vunpack.c.l.b16 %v734
        %v767 = vunpack.c.l.b16 %v735
        %v768 = vunpack.c.l.b16 %v736
        %v769 = vunpack.c.l.b16 %v737
        %v770 = vunpack.c.l.b16 %v738
        %v771 = vunpack.c.l.b16 %v739
        %v772 = vunpack.c.l.b16 %v740
        %v773 = vunpack.c.l.b16 %v741
        %v774 = vunpack.c.l.b16 %v742
        %v775 = vunpack.c.l.b16 %v743
        %v776 = vunpack.c.l.b16 %v744
        %v777 = vunpack.c.l.b16 %v745
        %v778 = vpack.c.b16 %v763, %v762
        %v779 = vpack.c.b16 %v765, %v764
        %v780 = vpack.c.b16 %v767, %v766
        %v781 = vpack.c.b16 %v769, %v768
        %v782 = vpack.c.b16 %v771, %v770
        %v783 = vpack.c.b16 %v773, %v772
        %v784 = vpack.c.b16 %v775, %v774
        %v785 = vpack.c.b16 %v777, %v776
        %794 = vmatprep.subr.bf16.mxu0 0
        %795 = vmatpush1.bf16.msra.mxu0 %v785
        %796 = vmatprep.subr.bf16.mxu0 0
        %797 = vmatpush1.bf16.msra.mxu0 %v784
        %798 = vmatprep.subr.bf16.mxu0 0
        %799 = vmatpush1.bf16.msra.mxu0 %v783
        %800 = vmatprep.subr.bf16.mxu0 0
        %801 = vmatpush1.bf16.msra.mxu0 %v782
        %802 = vmatprep.subr.bf16.mxu0 0
        %803 = vmatpush1.bf16.msra.mxu0 %v781
        %804 = vmatprep.subr.bf16.mxu0 0
        %805 = vmatpush1.bf16.msra.mxu0 %v780
        %806 = vmatprep.subr.bf16.mxu0 0
        %807 = vmatpush1.bf16.msra.mxu0 %v779
        %808 = vmatprep.subr.bf16.mxu0 0
        %809 = vmatpush1.bf16.msra.mxu0 %v778
        %810 = vmatprep.subr.bf16.mxu0 0
        %811 = vmatpush2.bf16.msra.mxu0 0
        %812 = vmatprep.subr.bf16.mxu0 0
        %813 = vmatpush2.bf16.msra.mxu0 0
        %814 = vmatprep.subr.bf16.mxu0 0
        %815 = vmatpush2.bf16.msra.mxu0 0
        %816 = vmatprep.subr.bf16.mxu0 0
        %817 = vmatpush2.bf16.msra.mxu0 0
        %818 = vmatprep.subr.bf16.mxu0 0
        %819 = vmatpush2.bf16.msra.mxu0 0
        %820 = vmatprep.subr.bf16.mxu0 0
        %821 = vmatpush2.bf16.msra.mxu0 0
        %822 = vmatprep.subr.bf16.mxu0 0
        %823 = vmatpush2.bf16.msra.mxu0 0
        %824 = vmatprep.subr.bf16.mxu0 0
        %825 = vmatpush2.bf16.msra.mxu0 0
        %826 = vmatprep.mubr.bf16.mxu0 0
        %827 = vmatmul.mubr.bf16.gmra.mxu0 %v720
        %v828 = vpop.f32.mrf.mxu0
        %v829 = vadd.f32 0.0, %v828
        %v830 = vpop.f32.mrf.mxu0
        %v831 = vpop.f32.mrf.mxu0
        %v832 = vadd.f32 0.0, %v831
        %v833 = vpop.f32.mrf.mxu0
        %834 = vmatprep.mubr.bf16.mxu0 0
        %835 = vmatmul.mubr.bf16.gmra.mxu0 %v721
        %v836 = vpop.f32.mrf.mxu0
        %v837 = vadd.f32 0.0, %v836
        %v838 = vpop.f32.mrf.mxu0
        %v839 = vpop.f32.mrf.mxu0
        %v840 = vadd.f32 0.0, %v839
        %v841 = vpop.f32.mrf.mxu0
        %842 = vdwg.mxu0
        %v843 = vld [vmem:[#allocation10] sm:$0xf]
        %v844 = vld [vmem:[#allocation10 + $0x4] sm:$0xf]
        %v845 = vld [vmem:[#allocation10 + $0x8] sm:$0xf]
        %v846 = vld [vmem:[#allocation10 + $0xc] sm:$0xf]
        %v847 = vld [vmem:[#allocation10 + $0x10] sm:$0xf]
        %v848 = vld [vmem:[#allocation10 + $0x14] sm:$0xf]
        %v849 = vld [vmem:[#allocation10 + $0x18] sm:$0xf]
        %v850 = vld [vmem:[#allocation10 + $0x1c] sm:$0xf]
        %v851 = vld [vmem:[#allocation10 + $0x20] sm:$0xf]
        %v852 = vld [vmem:[#allocation10 + $0x24] sm:$0xf]
        %v853 = vld [vmem:[#allocation10 + $0x28] sm:$0xf]
        %v854 = vld [vmem:[#allocation10 + $0x2c] sm:$0xf]
        %v855 = vld [vmem:[#allocation10 + $0x30] sm:$0xf]
        %v856 = vld [vmem:[#allocation10 + $0x34] sm:$0xf]
        %v857 = vld [vmem:[#allocation10 + $0x38] sm:$0xf]
        %v858 = vld [vmem:[#allocation10 + $0x3c] sm:$0xf]
        %v875 = vunpack.c.l.b16 %v843
        %v876 = vunpack.c.l.b16 %v844
        %v877 = vunpack.c.l.b16 %v845
        %v878 = vunpack.c.l.b16 %v846
        %v879 = vunpack.c.l.b16 %v847
        %v880 = vunpack.c.l.b16 %v848
        %v881 = vunpack.c.l.b16 %v849
        %v882 = vunpack.c.l.b16 %v850
        %v883 = vunpack.c.l.b16 %v851
        %v884 = vunpack.c.l.b16 %v852
        %v885 = vunpack.c.l.b16 %v853
        %v886 = vunpack.c.l.b16 %v854
        %v887 = vunpack.c.l.b16 %v855
        %v888 = vunpack.c.l.b16 %v856
        %v889 = vunpack.c.l.b16 %v857
        %v890 = vunpack.c.l.b16 %v858
        %v891 = vpack.c.b16 %v876, %v875
        %v892 = vpack.c.b16 %v878, %v877
        %v893 = vpack.c.b16 %v880, %v879
        %v894 = vpack.c.b16 %v882, %v881
        %v895 = vpack.c.b16 %v884, %v883
        %v896 = vpack.c.b16 %v886, %v885
        %v897 = vpack.c.b16 %v888, %v887
        %v898 = vpack.c.b16 %v890, %v889
        %907 = vmatprep.subr.bf16.mxu0 0
        %908 = vmatpush1.bf16.msra.mxu0 %v898
        %909 = vmatprep.subr.bf16.mxu0 0
        %910 = vmatpush1.bf16.msra.mxu0 %v897
        %911 = vmatprep.subr.bf16.mxu0 0
        %912 = vmatpush1.bf16.msra.mxu0 %v896
        %913 = vmatprep.subr.bf16.mxu0 0
        %914 = vmatpush1.bf16.msra.mxu0 %v895
        %915 = vmatprep.subr.bf16.mxu0 0
        %916 = vmatpush1.bf16.msra.mxu0 %v894
        %917 = vmatprep.subr.bf16.mxu0 0
        %918 = vmatpush1.bf16.msra.mxu0 %v893
        %919 = vmatprep.subr.bf16.mxu0 0
        %920 = vmatpush1.bf16.msra.mxu0 %v892
        %921 = vmatprep.subr.bf16.mxu0 0
        %922 = vmatpush1.bf16.msra.mxu0 %v891
        %923 = vmatprep.subr.bf16.mxu0 0
        %924 = vmatpush2.bf16.msra.mxu0 0
        %925 = vmatprep.subr.bf16.mxu0 0
        %926 = vmatpush2.bf16.msra.mxu0 0
        %927 = vmatprep.subr.bf16.mxu0 0
        %928 = vmatpush2.bf16.msra.mxu0 0
        %929 = vmatprep.subr.bf16.mxu0 0
        %930 = vmatpush2.bf16.msra.mxu0 0
        %931 = vmatprep.subr.bf16.mxu0 0
        %932 = vmatpush2.bf16.msra.mxu0 0
        %933 = vmatprep.subr.bf16.mxu0 0
        %934 = vmatpush2.bf16.msra.mxu0 0
        %935 = vmatprep.subr.bf16.mxu0 0
        %936 = vmatpush2.bf16.msra.mxu0 0
        %937 = vmatprep.subr.bf16.mxu0 0
        %938 = vmatpush2.bf16.msra.mxu0 0
        %939 = vmatprep.mubr.bf16.mxu0 0
        %940 = vmatmul.mubr.bf16.gmra.mxu0 %v726
        %v941 = vpop.f32.mrf.mxu0
        %v942 = vadd.f32 0.0, %v941
        %v943 = vpop.f32.mrf.mxu0
        %v944 = vpop.f32.mrf.mxu0
        %v945 = vadd.f32 0.0, %v944
        %v946 = vpop.f32.mrf.mxu0
        %947 = vmatprep.mubr.bf16.mxu0 0
        %948 = vmatmul.mubr.bf16.gmra.mxu0 %v727
        %v949 = vpop.f32.mrf.mxu0
        %v950 = vadd.f32 0.0, %v949
        %v951 = vpop.f32.mrf.mxu0
        %v952 = vpop.f32.mrf.mxu0
        %v953 = vadd.f32 0.0, %v952
        %v954 = vpop.f32.mrf.mxu0
        %955 = vdwg.mxu0
        %v956 = vld [vmem:[#allocation11] sm:$0xf]
        %v957 = vld [vmem:[#allocation11 + $0x4] sm:$0xf]
        %v958 = vld [vmem:[#allocation11 + $0x8] sm:$0xf]
        %v959 = vld [vmem:[#allocation11 + $0xc] sm:$0xf]
        %v960 = vld [vmem:[#allocation11 + $0x10] sm:$0xf]
        %v961 = vld [vmem:[#allocation11 + $0x14] sm:$0xf]
        %v962 = vld [vmem:[#allocation11 + $0x18] sm:$0xf]
        %v963 = vld [vmem:[#allocation11 + $0x1c] sm:$0xf]
        %v964 = vld [vmem:[#allocation11 + $0x20] sm:$0xf]
        %v965 = vld [vmem:[#allocation11 + $0x24] sm:$0xf]
        %v966 = vld [vmem:[#allocation11 + $0x28] sm:$0xf]
        %v967 = vld [vmem:[#allocation11 + $0x2c] sm:$0xf]
        %v968 = vld [vmem:[#allocation11 + $0x30] sm:$0xf]
        %v969 = vld [vmem:[#allocation11 + $0x34] sm:$0xf]
        %v970 = vld [vmem:[#allocation11 + $0x38] sm:$0xf]
        %v971 = vld [vmem:[#allocation11 + $0x3c] sm:$0xf]
        %v988 = vunpack.c.l.b16 %v956
        %v989 = vunpack.c.l.b16 %v957
        %v990 = vunpack.c.l.b16 %v958
        %v991 = vunpack.c.l.b16 %v959
        %v992 = vunpack.c.l.b16 %v960
        %v993 = vunpack.c.l.b16 %v961
        %v994 = vunpack.c.l.b16 %v962
        %v995 = vunpack.c.l.b16 %v963
        %v996 = vunpack.c.l.b16 %v964
        %v997 = vunpack.c.l.b16 %v965
        %v998 = vunpack.c.l.b16 %v966
        %v999 = vunpack.c.l.b16 %v967
        %v1000 = vunpack.c.l.b16 %v968
        %v1001 = vunpack.c.l.b16 %v969
        %v1002 = vunpack.c.l.b16 %v970
        %v1003 = vunpack.c.l.b16 %v971
        %v1004 = vpack.c.b16 %v989, %v988
        %v1005 = vpack.c.b16 %v991, %v990
        %v1006 = vpack.c.b16 %v993, %v992
        %v1007 = vpack.c.b16 %v995, %v994
        %v1008 = vpack.c.b16 %v997, %v996
        %v1009 = vpack.c.b16 %v999, %v998
        %v1010 = vpack.c.b16 %v1001, %v1000
        %v1011 = vpack.c.b16 %v1003, %v1002
        %1020 = vmatprep.subr.bf16.mxu0 0
        %1021 = vmatpush1.bf16.msra.mxu0 %v1011
        %1022 = vmatprep.subr.bf16.mxu0 0
        %1023 = vmatpush1.bf16.msra.mxu0 %v1010
        %1024 = vmatprep.subr.bf16.mxu0 0
        %1025 = vmatpush1.bf16.msra.mxu0 %v1009
        %1026 = vmatprep.subr.bf16.mxu0 0
        %1027 = vmatpush1.bf16.msra.mxu0 %v1008
        %1028 = vmatprep.subr.bf16.mxu0 0
        %1029 = vmatpush1.bf16.msra.mxu0 %v1007
        %1030 = vmatprep.subr.bf16.mxu0 0
        %1031 = vmatpush1.bf16.msra.mxu0 %v1006
        %1032 = vmatprep.subr.bf16.mxu0 0
        %1033 = vmatpush1.bf16.msra.mxu0 %v1005
        %1034 = vmatprep.subr.bf16.mxu0 0
        %1035 = vmatpush1.bf16.msra.mxu0 %v1004
        %1036 = vmatprep.subr.bf16.mxu0 0
        %1037 = vmatpush2.bf16.msra.mxu0 0
        %1038 = vmatprep.subr.bf16.mxu0 0
        %1039 = vmatpush2.bf16.msra.mxu0 0
        %1040 = vmatprep.subr.bf16.mxu0 0
        %1041 = vmatpush2.bf16.msra.mxu0 0
        %1042 = vmatprep.subr.bf16.mxu0 0
        %1043 = vmatpush2.bf16.msra.mxu0 0
        %1044 = vmatprep.subr.bf16.mxu0 0
        %1045 = vmatpush2.bf16.msra.mxu0 0
        %1046 = vmatprep.subr.bf16.mxu0 0
        %1047 = vmatpush2.bf16.msra.mxu0 0
        %1048 = vmatprep.subr.bf16.mxu0 0
        %1049 = vmatpush2.bf16.msra.mxu0 0
        %1050 = vmatprep.subr.bf16.mxu0 0
        %1051 = vmatpush2.bf16.msra.mxu0 0
        %1052 = vmatprep.mubr.bf16.mxu0 0
        %1053 = vmatmul.mubr.bf16.gmra.mxu0 %v728
        %v1054 = vpop.f32.mrf.mxu0
        %v1055 = vadd.f32 0.0, %v1054
        %v1056 = vpop.f32.mrf.mxu0
        %v1057 = vpop.f32.mrf.mxu0
        %v1058 = vadd.f32 0.0, %v1057
        %v1059 = vpop.f32.mrf.mxu0
        %1060 = vmatprep.mubr.bf16.mxu0 0
        %1061 = vmatmul.mubr.bf16.gmra.mxu0 %v729
        %v1062 = vpop.f32.mrf.mxu0
        %v1063 = vadd.f32 0.0, %v1062
        %v1064 = vpop.f32.mrf.mxu0
        %v1065 = vpop.f32.mrf.mxu0
        %v1066 = vadd.f32 0.0, %v1065
        %v1067 = vpop.f32.mrf.mxu0
        %1068 = vdwg.mxu0
        %v1069 = vld [vmem:[#allocation13] sm:$0xf]
        %v1070 = vld [vmem:[#allocation13 + $0x4] sm:$0xf]
        %v1071 = vld [vmem:[#allocation13 + $0x8] sm:$0xf]
        %v1072 = vld [vmem:[#allocation13 + $0xc] sm:$0xf]
        %v1073 = vld [vmem:[#allocation13 + $0x10] sm:$0xf]
        %v1074 = vld [vmem:[#allocation13 + $0x14] sm:$0xf]
        %v1075 = vld [vmem:[#allocation13 + $0x18] sm:$0xf]
        %v1076 = vld [vmem:[#allocation13 + $0x1c] sm:$0xf]
        %v1077 = vld [vmem:[#allocation13 + $0x20] sm:$0xf]
        %v1078 = vld [vmem:[#allocation13 + $0x24] sm:$0xf]
        %v1079 = vld [vmem:[#allocation13 + $0x28] sm:$0xf]
        %v1080 = vld [vmem:[#allocation13 + $0x2c] sm:$0xf]
        %v1081 = vld [vmem:[#allocation13 + $0x30] sm:$0xf]
        %v1082 = vld [vmem:[#allocation13 + $0x34] sm:$0xf]
        %v1083 = vld [vmem:[#allocation13 + $0x38] sm:$0xf]
        %v1084 = vld [vmem:[#allocation13 + $0x3c] sm:$0xf]
        %v1085 = vpack.c.bf16 %v1058, %v1055
        %v1086 = vpack.c.bf16 %v1066, %v1063
        %v1087 = vpack.c.bf16 %v945, %v942
        %v1088 = vpack.c.bf16 %v953, %v950
        %v1089 = vpack.c.bf16 %v832, %v829
        %v1090 = vpack.c.bf16 %v840, %v837
        %1091 = vmatprep.subr.bf16.mxu0 0
        %1092 = vmatpush1.bf16.xpose.msra.mxu0 0
        %1093 = vmatprep.subr.bf16.mxu0 0
        %1094 = vmatpush1.bf16.xpose.msra.mxu0 0
        %1095 = vmatprep.subr.bf16.mxu0 0
        %1096 = vmatpush1.bf16.xpose.msra.mxu0 0
        %1097 = vmatprep.subr.bf16.mxu0 0
        %1098 = vmatpush1.bf16.xpose.msra.mxu0 0
        %1099 = vmatprep.subr.bf16.mxu0 0
        %1100 = vmatpush1.bf16.xpose.msra.mxu0 0
        %1101 = vmatprep.subr.bf16.mxu0 0
        %1102 = vmatpush1.bf16.xpose.msra.mxu0 0
        %1103 = vmatprep.subr.bf16.mxu0 0
        %1104 = vmatpush1.bf16.xpose.msra.mxu0 0
        %1105 = vmatprep.subr.bf16.mxu0 0
        %1106 = vmatpush1.bf16.xpose.msra.mxu0 %v1087
        %1107 = vmatprep.subr.bf16.mxu0 0
        %1108 = vmatpush2.bf16.xpose.msra.mxu0 0
        %1109 = vmatprep.subr.bf16.mxu0 0
        %1110 = vmatpush2.bf16.xpose.msra.mxu0 0
        %1111 = vmatprep.subr.bf16.mxu0 0
        %1112 = vmatpush2.bf16.xpose.msra.mxu0 0
        %1113 = vmatprep.subr.bf16.mxu0 0
        %1114 = vmatpush2.bf16.xpose.msra.mxu0 0
        %1115 = vmatprep.subr.bf16.mxu0 0
        %1116 = vmatpush2.bf16.xpose.msra.mxu0 0
        %1117 = vmatprep.subr.bf16.mxu0 0
        %1118 = vmatpush2.bf16.xpose.msra.mxu0 0
        %1119 = vmatprep.subr.bf16.mxu0 0
        %1120 = vmatpush2.bf16.xpose.msra.mxu0 0
        %1121 = vmatprep.subr.bf16.mxu0 0
        %1122 = vmatpush2.bf16.xpose.msra.mxu0 0
        %1123 = vmatprep.mubr.bf16.mxu0 0
        %1124 = vmatmul.mubr.bf16.gmra.mxu0 %v1085
        %v1125 = vpop.f32.mrf.mxu0
        %v1126 = vadd.f32 0.0, %v1125
        %v1127 = vpop.f32.mrf.mxu0
        %v1128 = vpop.f32.mrf.mxu0
        %v1129 = vadd.f32 0.0, %v1128
        %v1130 = vpop.f32.mrf.mxu0
        %1131 = vdwg.mxu0
        %1132 = vmatprep.subr.bf16.mxu0 0
        %1133 = vmatpush1.bf16.xpose.msra.mxu0 0
        %1134 = vmatprep.subr.bf16.mxu0 0
        %1135 = vmatpush1.bf16.xpose.msra.mxu0 0
        %1136 = vmatprep.subr.bf16.mxu0 0
        %1137 = vmatpush1.bf16.xpose.msra.mxu0 0
        %1138 = vmatprep.subr.bf16.mxu0 0
        %1139 = vmatpush1.bf16.xpose.msra.mxu0 0
        %1140 = vmatprep.subr.bf16.mxu0 0
        %1141 = vmatpush1.bf16.xpose.msra.mxu0 0
        %1142 = vmatprep.subr.bf16.mxu0 0
        %1143 = vmatpush1.bf16.xpose.msra.mxu0 0
        %1144 = vmatprep.subr.bf16.mxu0 0
        %1145 = vmatpush1.bf16.xpose.msra.mxu0 0
        %1146 = vmatprep.subr.bf16.mxu0 0
        %1147 = vmatpush1.bf16.xpose.msra.mxu0 %v1088
        %1148 = vmatprep.subr.bf16.mxu0 0
        %1149 = vmatpush2.bf16.xpose.msra.mxu0 0
        %1150 = vmatprep.subr.bf16.mxu0 0
        %1151 = vmatpush2.bf16.xpose.msra.mxu0 0
        %1152 = vmatprep.subr.bf16.mxu0 0
        %1153 = vmatpush2.bf16.xpose.msra.mxu0 0
        %1154 = vmatprep.subr.bf16.mxu0 0
        %1155 = vmatpush2.bf16.xpose.msra.mxu0 0
        %1156 = vmatprep.subr.bf16.mxu0 0
        %1157 = vmatpush2.bf16.xpose.msra.mxu0 0
        %1158 = vmatprep.subr.bf16.mxu0 0
        %1159 = vmatpush2.bf16.xpose.msra.mxu0 0
        %1160 = vmatprep.subr.bf16.mxu0 0
        %1161 = vmatpush2.bf16.xpose.msra.mxu0 0
        %1162 = vmatprep.subr.bf16.mxu0 0
        %1163 = vmatpush2.bf16.xpose.msra.mxu0 0
        %1164 = vmatprep.mubr.bf16.mxu0 0
        %1165 = vmatmul.mubr.bf16.gmra.mxu0 %v1086
        %v1166 = vpop.f32.mrf.mxu0
        %v1167 = vadd.f32 0.0, %v1166
        %v1168 = vpop.f32.mrf.mxu0
        %v1169 = vpop.f32.mrf.mxu0
        %v1170 = vadd.f32 0.0, %v1169
        %v1171 = vpop.f32.mrf.mxu0
        %1172 = vdwg.mxu0
        %vm1173 = vcmask 130048
        %v1174 = vsel %vm1173, %v1126, -inf
        %1175 = vmax.xlane.f32.xlu0 %v1174
        %v1176 = vpop.xlane.xlu0 %1175
        %v1177 = vsel %vm1173, %v1129, -inf
        %1178 = vmax.xlane.f32.xlu0 %v1177
        %v1179 = vpop.xlane.xlu0 %1178
        %v1180 = vsel %vm1173, %v1167, -inf
        %1181 = vmax.xlane.f32.xlu0 %v1180
        %v1182 = vpop.xlane.xlu0 %1181
        %v1183 = vsel %vm1173, %v1170, -inf
        %1184 = vmax.xlane.f32.xlu0 %v1183
        %v1185 = vpop.xlane.xlu0 %1184
        %v1186 = vsub.f32 %v1126, %v1176
        %v1187 = vsub.f32 %v1129, %v1179
        %v1188 = vsub.f32 %v1167, %v1182
        %v1189 = vsub.f32 %v1170, %v1185
        %v1190 = vmul.f32 %v1186, 1.442695
        %v1191 = vpow.pop %v1190
        %v1192 = vmul.f32 %v1187, 1.442695
        %v1193 = vpow.pop %v1192
        %v1194 = vmul.f32 %v1188, 1.442695
        %v1195 = vpow.pop %v1194
        %v1196 = vmul.f32 %v1189, 1.442695
        %v1197 = vpow.pop %v1196
        %v1198 = vsel %vm1173, %v1191, 0.0
        %1199 = vadd.xlane.f32.xlu0 %v1198
        %v1200 = vpop.xlane.xlu0 %1199
        %v1201 = vsel %vm1173, %v1193, 0.0
        %1202 = vadd.xlane.f32.xlu0 %v1201
        %v1203 = vpop.xlane.xlu0 %1202
        %v1204 = vsel %vm1173, %v1195, 0.0
        %1205 = vadd.xlane.f32.xlu0 %v1204
        %v1206 = vpop.xlane.xlu0 %1205
        %v1207 = vsel %vm1173, %v1197, 0.0
        %1208 = vadd.xlane.f32.xlu0 %v1207
        %v1209 = vpop.xlane.xlu0 %1208
        %v1210 = vrcp.pop %v1200
        %v1211 = vrcp.pop %v1203
        %v1212 = vrcp.pop %v1206
        %v1213 = vrcp.pop %v1209
        %v1214 = vmul.f32 %v1191, %v1210
        %v1215 = vmul.f32 %v1193, %v1211
        %v1216 = vmul.f32 %v1195, %v1212
        %v1217 = vmul.f32 %v1197, %v1213
        %v1218 = vpack.c.bf16 %v1215, %v1214
        %v1219 = vpack.c.bf16 %v1217, %v1216
        %v1221 = vsel %vm1173, %v1218, 0
        %1223 = vmatprep.subr.bf16.mxu0 0
        %1224 = vmatpush1.bf16.msra.mxu0 0
        %1225 = vmatprep.subr.bf16.mxu0 0
        %1226 = vmatpush1.bf16.msra.mxu0 0
        %1227 = vmatprep.subr.bf16.mxu0 0
        %1228 = vmatpush1.bf16.msra.mxu0 0
        %1229 = vmatprep.subr.bf16.mxu0 0
        %1230 = vmatpush1.bf16.msra.mxu0 0
        %1231 = vmatprep.subr.bf16.mxu0 0
        %1232 = vmatpush1.bf16.msra.mxu0 0
        %1233 = vmatprep.subr.bf16.mxu0 0
        %1234 = vmatpush1.bf16.msra.mxu0 0
        %1235 = vmatprep.subr.bf16.mxu0 0
        %1236 = vmatpush1.bf16.msra.mxu0 0
        %1237 = vmatprep.subr.bf16.mxu0 0
        %1238 = vmatpush1.bf16.msra.mxu0 %v1089
        %1239 = vmatprep.subr.bf16.mxu0 0
        %1240 = vmatpush2.bf16.msra.mxu0 0
        %1241 = vmatprep.subr.bf16.mxu0 0
        %1242 = vmatpush2.bf16.msra.mxu0 0
        %1243 = vmatprep.subr.bf16.mxu0 0
        %1244 = vmatpush2.bf16.msra.mxu0 0
        %1245 = vmatprep.subr.bf16.mxu0 0
        %1246 = vmatpush2.bf16.msra.mxu0 0
        %1247 = vmatprep.subr.bf16.mxu0 0
        %1248 = vmatpush2.bf16.msra.mxu0 0
        %1249 = vmatprep.subr.bf16.mxu0 0
        %1250 = vmatpush2.bf16.msra.mxu0 0
        %1251 = vmatprep.subr.bf16.mxu0 0
        %1252 = vmatpush2.bf16.msra.mxu0 0
        %1253 = vmatprep.subr.bf16.mxu0 0
        %1254 = vmatpush2.bf16.msra.mxu0 0
        %1255 = vmatprep.mubr.bf16.mxu0 0
        %1256 = vmatmul.mubr.bf16.gmra.mxu0 %v1221
        %v1257 = vpop.f32.mrf.mxu0
        %v1258 = vadd.f32 0.0, %v1257
        %v1259 = vpop.f32.mrf.mxu0
        %v1260 = vpop.f32.mrf.mxu0
        %v1261 = vadd.f32 0.0, %v1260
        %v1262 = vpop.f32.mrf.mxu0
        %1263 = vdwg.mxu0
        %v1265 = vsel %vm1173, %v1219, 0
        %1267 = vmatprep.subr.bf16.mxu0 0
        %1268 = vmatpush1.bf16.msra.mxu0 0
        %1269 = vmatprep.subr.bf16.mxu0 0
        %1270 = vmatpush1.bf16.msra.mxu0 0
        %1271 = vmatprep.subr.bf16.mxu0 0
        %1272 = vmatpush1.bf16.msra.mxu0 0
        %1273 = vmatprep.subr.bf16.mxu0 0
        %1274 = vmatpush1.bf16.msra.mxu0 0
        %1275 = vmatprep.subr.bf16.mxu0 0
        %1276 = vmatpush1.bf16.msra.mxu0 0
        %1277 = vmatprep.subr.bf16.mxu0 0
        %1278 = vmatpush1.bf16.msra.mxu0 0
        %1279 = vmatprep.subr.bf16.mxu0 0
        %1280 = vmatpush1.bf16.msra.mxu0 0
        %1281 = vmatprep.subr.bf16.mxu0 0
        %1282 = vmatpush1.bf16.msra.mxu0 %v1090
        %1283 = vmatprep.subr.bf16.mxu0 0
        %1284 = vmatpush2.bf16.msra.mxu0 0
        %1285 = vmatprep.subr.bf16.mxu0 0
        %1286 = vmatpush2.bf16.msra.mxu0 0
        %1287 = vmatprep.subr.bf16.mxu0 0
        %1288 = vmatpush2.bf16.msra.mxu0 0
        %1289 = vmatprep.subr.bf16.mxu0 0
        %1290 = vmatpush2.bf16.msra.mxu0 0
        %1291 = vmatprep.subr.bf16.mxu0 0
        %1292 = vmatpush2.bf16.msra.mxu0 0
        %1293 = vmatprep.subr.bf16.mxu0 0
        %1294 = vmatpush2.bf16.msra.mxu0 0
        %1295 = vmatprep.subr.bf16.mxu0 0
        %1296 = vmatpush2.bf16.msra.mxu0 0
        %1297 = vmatprep.subr.bf16.mxu0 0
        %1298 = vmatpush2.bf16.msra.mxu0 0
        %1299 = vmatprep.mubr.bf16.mxu0 0
        %1300 = vmatmul.mubr.bf16.gmra.mxu0 %v1265
        %v1301 = vpop.f32.mrf.mxu0
        %v1302 = vadd.f32 0.0, %v1301
        %v1303 = vpop.f32.mrf.mxu0
        %v1304 = vpop.f32.mrf.mxu0
        %v1305 = vadd.f32 0.0, %v1304
        %v1306 = vpop.f32.mrf.mxu0
        %1307 = vdwg.mxu0
        %v1308 = vpack.c.bf16 %v1261, %v1258
        %v1309 = vpack.c.bf16 %v1305, %v1302
        %v1310 = vld [vmem:[%s7] sm:$0x1]
        %v1312 = vlaneseq
        %v1313 = vshrl.u32 %v1312, 7
        %v1314 = vsub.s32 0, %v1313
        %v1315 = vrot.slane %v1310, %v1314
        %v1333 = vunpack.c.l.b16 %v1069
        %v1334 = vunpack.c.l.b16 %v1070
        %v1335 = vunpack.c.l.b16 %v1071
        %v1336 = vunpack.c.l.b16 %v1072
        %v1337 = vunpack.c.l.b16 %v1073
        %v1338 = vunpack.c.l.b16 %v1074
        %v1339 = vunpack.c.l.b16 %v1075
        %v1340 = vunpack.c.l.b16 %v1076
        %v1341 = vunpack.c.l.b16 %v1077
        %v1342 = vunpack.c.l.b16 %v1078
        %v1343 = vunpack.c.l.b16 %v1079
        %v1344 = vunpack.c.l.b16 %v1080
        %v1345 = vunpack.c.l.b16 %v1081
        %v1346 = vunpack.c.l.b16 %v1082
        %v1347 = vunpack.c.l.b16 %v1083
        %v1348 = vunpack.c.l.b16 %v1084
        %v1349 = vpack.c.b16 %v1334, %v1333
        %v1350 = vpack.c.b16 %v1336, %v1335
        %v1351 = vpack.c.b16 %v1338, %v1337
        %v1352 = vpack.c.b16 %v1340, %v1339
        %v1353 = vpack.c.b16 %v1342, %v1341
        %v1354 = vpack.c.b16 %v1344, %v1343
        %v1355 = vpack.c.b16 %v1346, %v1345
        %v1356 = vpack.c.b16 %v1348, %v1347
        %1365 = vmatprep.subr.bf16.mxu0 0
        %1366 = vmatpush1.bf16.msra.mxu0 %v1356
        %1367 = vmatprep.subr.bf16.mxu0 0
        %1368 = vmatpush1.bf16.msra.mxu0 %v1355
        %1369 = vmatprep.subr.bf16.mxu0 0
        %1370 = vmatpush1.bf16.msra.mxu0 %v1354
        %1371 = vmatprep.subr.bf16.mxu0 0
        %1372 = vmatpush1.bf16.msra.mxu0 %v1353
        %1373 = vmatprep.subr.bf16.mxu0 0
        %1374 = vmatpush1.bf16.msra.mxu0 %v1352
        %1375 = vmatprep.subr.bf16.mxu0 0
        %1376 = vmatpush1.bf16.msra.mxu0 %v1351
        %1377 = vmatprep.subr.bf16.mxu0 0
        %1378 = vmatpush1.bf16.msra.mxu0 %v1350
        %1379 = vmatprep.subr.bf16.mxu0 0
        %1380 = vmatpush1.bf16.msra.mxu0 %v1349
        %1381 = vmatprep.subr.bf16.mxu0 0
        %1382 = vmatpush2.bf16.msra.mxu0 0
        %1383 = vmatprep.subr.bf16.mxu0 0
        %1384 = vmatpush2.bf16.msra.mxu0 0
        %1385 = vmatprep.subr.bf16.mxu0 0
        %1386 = vmatpush2.bf16.msra.mxu0 0
        %1387 = vmatprep.subr.bf16.mxu0 0
        %1388 = vmatpush2.bf16.msra.mxu0 0
        %1389 = vmatprep.subr.bf16.mxu0 0
        %1390 = vmatpush2.bf16.msra.mxu0 0
        %1391 = vmatprep.subr.bf16.mxu0 0
        %1392 = vmatpush2.bf16.msra.mxu0 0
        %1393 = vmatprep.subr.bf16.mxu0 0
        %1394 = vmatpush2.bf16.msra.mxu0 0
        %1395 = vmatprep.subr.bf16.mxu0 0
        %1396 = vmatpush2.bf16.msra.mxu0 0
        %1397 = vmatprep.mubr.bf16.mxu0 0
        %1398 = vmatmul.mubr.bf16.gmra.mxu0 %v1308
        %v1399 = vpop.f32.mrf.mxu0
        %v1400 = vadd.f32 %v1315, %v1399
        %v1401 = vpop.f32.mrf.mxu0
        %v1402 = vpop.f32.mrf.mxu0
        %v1403 = vadd.f32 %v1315, %v1402
        %v1404 = vpop.f32.mrf.mxu0
        %1405 = vmatprep.mubr.bf16.mxu0 0
        %1406 = vmatmul.mubr.bf16.gmra.mxu0 %v1309
        %v1407 = vpop.f32.mrf.mxu0
        %v1408 = vadd.f32 %v1315, %v1407
        %v1409 = vpop.f32.mrf.mxu0
        %v1410 = vpop.f32.mrf.mxu0
        %v1411 = vadd.f32 %v1315, %v1410
        %v1412 = vpop.f32.mrf.mxu0
        %1413 = vdwg.mxu0
        %v1414 = vadd.f32 %v1400, %v712
        %v1415 = vadd.f32 %v1403, %v713
        %v1416 = vadd.f32 %v1408, %v714
        %v1417 = vadd.f32 %v1411, %v715
        %v1418 = vld [vmem:[%s8] sm:$0x1]
        %v1419 = vld [vmem:[%s9] sm:$0x1]
        %1420 = vadd.xlane.f32.xlu0 %v1414
        %v1421 = vpop.xlane.xlu0 %1420
        %1422 = vadd.xlane.f32.xlu0 %v1415
        %v1423 = vpop.xlane.xlu0 %1422
        %1424 = vadd.xlane.f32.xlu0 %v1416
        %v1425 = vpop.xlane.xlu0 %1424
        %1426 = vadd.xlane.f32.xlu0 %v1417
        %v1427 = vpop.xlane.xlu0 %1426
        %v1428 = vrcp.pop 128.0
        %v1429 = vmul.f32 %v1421, %v1428
        %v1430 = vmul.f32 %v1423, %v1428
        %v1431 = vmul.f32 %v1425, %v1428
        %v1432 = vmul.f32 %v1427, %v1428
        %v1433 = vsub.f32 %v1414, %v1429
        %v1434 = vsub.f32 %v1415, %v1430
        %v1435 = vsub.f32 %v1416, %v1431
        %v1436 = vsub.f32 %v1417, %v1432
        %v1437 = vmul.f32 %v1433, %v1433
        %v1438 = vmul.f32 %v1434, %v1434
        %v1439 = vmul.f32 %v1435, %v1435
        %v1440 = vmul.f32 %v1436, %v1436
        %1441 = vadd.xlane.f32.xlu0 %v1437
        %v1442 = vpop.xlane.xlu0 %1441
        %1443 = vadd.xlane.f32.xlu0 %v1438
        %v1444 = vpop.xlane.xlu0 %1443
        %1445 = vadd.xlane.f32.xlu0 %v1439
        %v1446 = vpop.xlane.xlu0 %1445
        %1447 = vadd.xlane.f32.xlu0 %v1440
        %v1448 = vpop.xlane.xlu0 %1447
        %v1449 = vmul.f32 %v1442, %v1428
        %v1450 = vmul.f32 %v1444, %v1428
        %v1451 = vmul.f32 %v1446, %v1428
        %v1452 = vmul.f32 %v1448, %v1428
        %v1453 = vadd.f32 %v1449, 1e-05
        %v1454 = vadd.f32 %v1450, 1e-05
        %v1455 = vadd.f32 %v1451, 1e-05
        %v1456 = vadd.f32 %v1452, 1e-05
        %v1457 = vrsqrt.pop %v1453
        %v1458 = vrsqrt.pop %v1454
        %v1459 = vrsqrt.pop %v1455
        %v1460 = vrsqrt.pop %v1456
        %v1461 = vmul.f32 %v1433, %v1457
        %v1462 = vmul.f32 %v1434, %v1458
        %v1463 = vmul.f32 %v1435, %v1459
        %v1464 = vmul.f32 %v1436, %v1460
        %v1466 = vlaneseq
        %v1467 = vshrl.u32 %v1466, 7
        %v1468 = vsub.s32 0, %v1467
        %v1469 = vrot.slane %v1418, %v1468
        %v1471 = vmul.f32 %v1461, %v1469
        %v1472 = vmul.f32 %v1462, %v1469
        %v1473 = vmul.f32 %v1463, %v1469
        %v1474 = vmul.f32 %v1464, %v1469
        %v1476 = vlaneseq
        %v1477 = vshrl.u32 %v1476, 7
        %v1478 = vsub.s32 0, %v1477
        %v1479 = vrot.slane %v1419, %v1478
        %v1481 = vadd.f32 %v1471, %v1479
        %v1482 = vadd.f32 %v1472, %v1479
        %v1483 = vadd.f32 %v1473, %v1479
        %v1484 = vadd.f32 %v1474, %v1479
        %v1485 = vpack.c.bf16 %v1482, %v1481
        %v1486 = vpack.c.bf16 %v1484, %v1483
        %v1487 = vld [vmem:[#allocation14] sm:$0xff]
        %v1488 = vld [vmem:[#allocation14 + $0x8] sm:$0xff]
        %v1489 = vld [vmem:[#allocation14 + $0x10] sm:$0xff]
        %v1490 = vld [vmem:[#allocation14 + $0x18] sm:$0xff]
        %v1491 = vld [vmem:[#allocation14 + $0x20] sm:$0xff]
        %v1492 = vld [vmem:[#allocation14 + $0x28] sm:$0xff]
        %v1493 = vld [vmem:[#allocation14 + $0x30] sm:$0xff]
        %v1494 = vld [vmem:[#allocation14 + $0x38] sm:$0xff]
        %v1495 = vld [vmem:[#allocation14 + $0x40] sm:$0xff]
        %v1496 = vld [vmem:[#allocation14 + $0x48] sm:$0xff]
        %v1497 = vld [vmem:[#allocation14 + $0x50] sm:$0xff]
        %v1498 = vld [vmem:[#allocation14 + $0x58] sm:$0xff]
        %v1499 = vld [vmem:[#allocation14 + $0x60] sm:$0xff]
        %v1500 = vld [vmem:[#allocation14 + $0x68] sm:$0xff]
        %v1501 = vld [vmem:[#allocation14 + $0x70] sm:$0xff]
        %v1502 = vld [vmem:[#allocation14 + $0x78] sm:$0xff]
        %v1503 = vld [vmem:[%s11] sm:$0x3]
        %v1505 = vlaneseq
        %v1506 = vshrl.u32 %v1505, 7
        %v1507 = vsub.s32 0, %v1506
        %v1508 = vrot.slane %v1503, %v1507
        %v1509 = vlaneseq
        %v1510 = vshrl.u32 %v1509, 7
        %v1511 = vsub.s32 1, %v1510
        %v1512 = vrot.slane %v1503, %v1511
        %v1531 = vunpack.c.l.b16 %v1487
        %v1532 = vunpack.c.h.b16 %v1487
        %v1533 = vunpack.c.l.b16 %v1488
        %v1534 = vunpack.c.h.b16 %v1488
        %v1535 = vunpack.c.l.b16 %v1489
        %v1536 = vunpack.c.h.b16 %v1489
        %v1537 = vunpack.c.l.b16 %v1490
        %v1538 = vunpack.c.h.b16 %v1490
        %v1539 = vunpack.c.l.b16 %v1491
        %v1540 = vunpack.c.h.b16 %v1491
        %v1541 = vunpack.c.l.b16 %v1492
        %v1542 = vunpack.c.h.b16 %v1492
        %v1543 = vunpack.c.l.b16 %v1493
        %v1544 = vunpack.c.h.b16 %v1493
        %v1545 = vunpack.c.l.b16 %v1494
        %v1546 = vunpack.c.h.b16 %v1494
        %v1547 = vunpack.c.l.b16 %v1495
        %v1548 = vunpack.c.h.b16 %v1495
        %v1549 = vunpack.c.l.b16 %v1496
        %v1550 = vunpack.c.h.b16 %v1496
        %v1551 = vunpack.c.l.b16 %v1497
        %v1552 = vunpack.c.h.b16 %v1497
        %v1553 = vunpack.c.l.b16 %v1498
        %v1554 = vunpack.c.h.b16 %v1498
        %v1555 = vunpack.c.l.b16 %v1499
        %v1556 = vunpack.c.h.b16 %v1499
        %v1557 = vunpack.c.l.b16 %v1500
        %v1558 = vunpack.c.h.b16 %v1500
        %v1559 = vunpack.c.l.b16 %v1501
        %v1560 = vunpack.c.h.b16 %v1501
        %v1561 = vunpack.c.l.b16 %v1502
        %v1562 = vunpack.c.h.b16 %v1502
        %v1563 = vpack.c.b16 %v1533, %v1531
        %v1564 = vpack.c.b16 %v1534, %v1532
        %v1565 = vpack.c.b16 %v1537, %v1535
        %v1566 = vpack.c.b16 %v1538, %v1536
        %v1567 = vpack.c.b16 %v1541, %v1539
        %v1568 = vpack.c.b16 %v1542, %v1540
        %v1569 = vpack.c.b16 %v1545, %v1543
        %v1570 = vpack.c.b16 %v1546, %v1544
        %v1571 = vpack.c.b16 %v1549, %v1547
        %v1572 = vpack.c.b16 %v1550, %v1548
        %v1573 = vpack.c.b16 %v1553, %v1551
        %v1574 = vpack.c.b16 %v1554, %v1552
        %v1575 = vpack.c.b16 %v1557, %v1555
        %v1576 = vpack.c.b16 %v1558, %v1556
        %v1577 = vpack.c.b16 %v1561, %v1559
        %v1578 = vpack.c.b16 %v1562, %v1560
        %1595 = vmatprep.subr.bf16.mxu0 %v1578
        %1596 = vmatpush1.bf16.msra.mxu0 %v1577
        %1597 = vmatprep.subr.bf16.mxu0 %v1576
        %1598 = vmatpush1.bf16.msra.mxu0 %v1575
        %1599 = vmatprep.subr.bf16.mxu0 %v1574
        %1600 = vmatpush1.bf16.msra.mxu0 %v1573
        %1601 = vmatprep.subr.bf16.mxu0 %v1572
        %1602 = vmatpush1.bf16.msra.mxu0 %v1571
        %1603 = vmatprep.subr.bf16.mxu0 %v1570
        %1604 = vmatpush1.bf16.msra.mxu0 %v1569
        %1605 = vmatprep.subr.bf16.mxu0 %v1568
        %1606 = vmatpush1.bf16.msra.mxu0 %v1567
        %1607 = vmatprep.subr.bf16.mxu0 %v1566
        %1608 = vmatpush1.bf16.msra.mxu0 %v1565
        %1609 = vmatprep.subr.bf16.mxu0 %v1564
        %1610 = vmatpush1.bf16.msra.mxu0 %v1563
        %1611 = vmatprep.subr.bf16.mxu0 0
        %1612 = vmatpush2.bf16.msra.mxu0 0
        %1613 = vmatprep.subr.bf16.mxu0 0
        %1614 = vmatpush2.bf16.msra.mxu0 0
        %1615 = vmatprep.subr.bf16.mxu0 0
        %1616 = vmatpush2.bf16.msra.mxu0 0
        %1617 = vmatprep.subr.bf16.mxu0 0
        %1618 = vmatpush2.bf16.msra.mxu0 0
        %1619 = vmatprep.subr.bf16.mxu0 0
        %1620 = vmatpush2.bf16.msra.mxu0 0
        %1621 = vmatprep.subr.bf16.mxu0 0
        %1622 = vmatpush2.bf16.msra.mxu0 0
        %1623 = vmatprep.subr.bf16.mxu0 0
        %1624 = vmatpush2.bf16.msra.mxu0 0
        %1625 = vmatprep.subr.bf16.mxu0 0
        %1626 = vmatpush2.bf16.msra.mxu0 0
        %1627 = vmatprep.mubr.bf16.mxu0 0
        %1628 = vmatmul.mubr.bf16.gmra.mxu0 %v1485
        %v1629 = vpop.f32.mrf.mxu0
        %v1630 = vadd.f32 %v1508, %v1629
        %v1631 = vpop.f32.mrf.mxu0
        %v1632 = vadd.f32 %v1512, %v1631
        %v1633 = vpop.f32.mrf.mxu0
        %v1634 = vadd.f32 %v1508, %v1633
        %v1635 = vpop.f32.mrf.mxu0
        %v1636 = vadd.f32 %v1512, %v1635
        %1637 = vmatprep.mubr.bf16.mxu0 0
        %1638 = vmatmul.mubr.bf16.gmra.mxu0 %v1486
        %v1639 = vpop.f32.mrf.mxu0
        %v1640 = vadd.f32 %v1508, %v1639
        %v1641 = vpop.f32.mrf.mxu0
        %v1642 = vadd.f32 %v1512, %v1641
        %v1643 = vpop.f32.mrf.mxu0
        %v1644 = vadd.f32 %v1508, %v1643
        %v1645 = vpop.f32.mrf.mxu0
        %v1646 = vadd.f32 %v1512, %v1645
        %1647 = vdwg.mxu0
        %v1648 = vmax.f32 %v1630, 0.0
        %v1649 = vmax.f32 %v1632, 0.0
        %v1650 = vmax.f32 %v1634, 0.0
        %v1651 = vmax.f32 %v1636, 0.0
        %v1652 = vmax.f32 %v1640, 0.0
        %v1653 = vmax.f32 %v1642, 0.0
        %v1654 = vmax.f32 %v1644, 0.0
        %v1655 = vmax.f32 %v1646, 0.0
        %v1656 = vpack.c.bf16 %v1650, %v1648
        %v1657 = vpack.c.bf16 %v1651, %v1649
        %v1658 = vpack.c.bf16 %v1654, %v1652
        %v1659 = vpack.c.bf16 %v1655, %v1653
        %v1660 = vld [vmem:[#allocation16] sm:$0xf]
        %v1661 = vld [vmem:[#allocation16 + $0x4] sm:$0xf]
        %v1662 = vld [vmem:[#allocation16 + $0x8] sm:$0xf]
        %v1663 = vld [vmem:[#allocation16 + $0xc] sm:$0xf]
        %v1664 = vld [vmem:[#allocation16 + $0x10] sm:$0xf]
        %v1665 = vld [vmem:[#allocation16 + $0x14] sm:$0xf]
        %v1666 = vld [vmem:[#allocation16 + $0x18] sm:$0xf]
        %v1667 = vld [vmem:[#allocation16 + $0x1c] sm:$0xf]
        %v1668 = vld [vmem:[#allocation16 + $0x20] sm:$0xf]
        %v1669 = vld [vmem:[#allocation16 + $0x24] sm:$0xf]
        %v1670 = vld [vmem:[#allocation16 + $0x28] sm:$0xf]
        %v1671 = vld [vmem:[#allocation16 + $0x2c] sm:$0xf]
        %v1672 = vld [vmem:[#allocation16 + $0x30] sm:$0xf]
        %v1673 = vld [vmem:[#allocation16 + $0x34] sm:$0xf]
        %v1674 = vld [vmem:[#allocation16 + $0x38] sm:$0xf]
        %v1675 = vld [vmem:[#allocation16 + $0x3c] sm:$0xf]
        %v1676 = vld [vmem:[#allocation16 + $0x40] sm:$0xf]
        %v1677 = vld [vmem:[#allocation16 + $0x44] sm:$0xf]
        %v1678 = vld [vmem:[#allocation16 + $0x48] sm:$0xf]
        %v1679 = vld [vmem:[#allocation16 + $0x4c] sm:$0xf]
        %v1680 = vld [vmem:[#allocation16 + $0x50] sm:$0xf]
        %v1681 = vld [vmem:[#allocation16 + $0x54] sm:$0xf]
        %v1682 = vld [vmem:[#allocation16 + $0x58] sm:$0xf]
        %v1683 = vld [vmem:[#allocation16 + $0x5c] sm:$0xf]
        %v1684 = vld [vmem:[#allocation16 + $0x60] sm:$0xf]
        %v1685 = vld [vmem:[#allocation16 + $0x64] sm:$0xf]
        %v1686 = vld [vmem:[#allocation16 + $0x68] sm:$0xf]
        %v1687 = vld [vmem:[#allocation16 + $0x6c] sm:$0xf]
        %v1688 = vld [vmem:[#allocation16 + $0x70] sm:$0xf]
        %v1689 = vld [vmem:[#allocation16 + $0x74] sm:$0xf]
        %v1690 = vld [vmem:[#allocation16 + $0x78] sm:$0xf]
        %v1691 = vld [vmem:[#allocation16 + $0x7c] sm:$0xf]
        %v1692 = vld [vmem:[%s13] sm:$0x1]
        %v1694 = vlaneseq
        %v1695 = vshrl.u32 %v1694, 7
        %v1696 = vsub.s32 0, %v1695
        %v1697 = vrot.slane %v1692, %v1696
        %v1731 = vunpack.c.l.b16 %v1660
        %v1732 = vunpack.c.l.b16 %v1661
        %v1733 = vunpack.c.l.b16 %v1662
        %v1734 = vunpack.c.l.b16 %v1663
        %v1735 = vunpack.c.l.b16 %v1664
        %v1736 = vunpack.c.l.b16 %v1665
        %v1737 = vunpack.c.l.b16 %v1666
        %v1738 = vunpack.c.l.b16 %v1667
        %v1739 = vunpack.c.l.b16 %v1668
        %v1740 = vunpack.c.l.b16 %v1669
        %v1741 = vunpack.c.l.b16 %v1670
        %v1742 = vunpack.c.l.b16 %v1671
        %v1743 = vunpack.c.l.b16 %v1672
        %v1744 = vunpack.c.l.b16 %v1673
        %v1745 = vunpack.c.l.b16 %v1674
        %v1746 = vunpack.c.l.b16 %v1675
        %v1747 = vunpack.c.l.b16 %v1676
        %v1748 = vunpack.c.l.b16 %v1677
        %v1749 = vunpack.c.l.b16 %v1678
        %v1750 = vunpack.c.l.b16 %v1679
        %v1751 = vunpack.c.l.b16 %v1680
        %v1752 = vunpack.c.l.b16 %v1681
        %v1753 = vunpack.c.l.b16 %v1682
        %v1754 = vunpack.c.l.b16 %v1683
        %v1755 = vunpack.c.l.b16 %v1684
        %v1756 = vunpack.c.l.b16 %v1685
        %v1757 = vunpack.c.l.b16 %v1686
        %v1758 = vunpack.c.l.b16 %v1687
        %v1759 = vunpack.c.l.b16 %v1688
        %v1760 = vunpack.c.l.b16 %v1689
        %v1761 = vunpack.c.l.b16 %v1690
        %v1762 = vunpack.c.l.b16 %v1691
        %v1763 = vpack.c.b16 %v1732, %v1731
        %v1764 = vpack.c.b16 %v1734, %v1733
        %v1765 = vpack.c.b16 %v1736, %v1735
        %v1766 = vpack.c.b16 %v1738, %v1737
        %v1767 = vpack.c.b16 %v1740, %v1739
        %v1768 = vpack.c.b16 %v1742, %v1741
        %v1769 = vpack.c.b16 %v1744, %v1743
        %v1770 = vpack.c.b16 %v1746, %v1745
        %v1771 = vpack.c.b16 %v1748, %v1747
        %v1772 = vpack.c.b16 %v1750, %v1749
        %v1773 = vpack.c.b16 %v1752, %v1751
        %v1774 = vpack.c.b16 %v1754, %v1753
        %v1775 = vpack.c.b16 %v1756, %v1755
        %v1776 = vpack.c.b16 %v1758, %v1757
        %v1777 = vpack.c.b16 %v1760, %v1759
        %v1778 = vpack.c.b16 %v1762, %v1761
        %1795 = vmatprep.subr.bf16.mxu0 0
        %1796 = vmatpush1.bf16.msra.mxu0 %v1770
        %1797 = vmatprep.subr.bf16.mxu0 0
        %1798 = vmatpush1.bf16.msra.mxu0 %v1769
        %1799 = vmatprep.subr.bf16.mxu0 0
        %1800 = vmatpush1.bf16.msra.mxu0 %v1768
        %1801 = vmatprep.subr.bf16.mxu0 0
        %1802 = vmatpush1.bf16.msra.mxu0 %v1767
        %1803 = vmatprep.subr.bf16.mxu0 0
        %1804 = vmatpush1.bf16.msra.mxu0 %v1766
        %1805 = vmatprep.subr.bf16.mxu0 0
        %1806 = vmatpush1.bf16.msra.mxu0 %v1765
        %1807 = vmatprep.subr.bf16.mxu0 0
        %1808 = vmatpush1.bf16.msra.mxu0 %v1764
        %1809 = vmatprep.subr.bf16.mxu0 0
        %1810 = vmatpush1.bf16.msra.mxu0 %v1763
        %1811 = vmatprep.subr.bf16.mxu0 0
        %1812 = vmatpush2.bf16.msra.mxu0 %v1778
        %1813 = vmatprep.subr.bf16.mxu0 0
        %1814 = vmatpush2.bf16.msra.mxu0 %v1777
        %1815 = vmatprep.subr.bf16.mxu0 0
        %1816 = vmatpush2.bf16.msra.mxu0 %v1776
        %1817 = vmatprep.subr.bf16.mxu0 0
        %1818 = vmatpush2.bf16.msra.mxu0 %v1775
        %1819 = vmatprep.subr.bf16.mxu0 0
        %1820 = vmatpush2.bf16.msra.mxu0 %v1774
        %1821 = vmatprep.subr.bf16.mxu0 0
        %1822 = vmatpush2.bf16.msra.mxu0 %v1773
        %1823 = vmatprep.subr.bf16.mxu0 0
        %1824 = vmatpush2.bf16.msra.mxu0 %v1772
        %1825 = vmatprep.subr.bf16.mxu0 0
        %1826 = vmatpush2.bf16.msra.mxu0 %v1771
        %1827 = vmatprep.mubr.bf16.mxu0 %v1657
        %1828 = vmatmul.mubr.bf16.gmra.mxu0 %v1656
        %v1829 = vpop.f32.mrf.mxu0
        %v1830 = vadd.f32 %v1697, %v1829
        %v1831 = vpop.f32.mrf.mxu0
        %v1832 = vpop.f32.mrf.mxu0
        %v1833 = vadd.f32 %v1697, %v1832
        %v1834 = vpop.f32.mrf.mxu0
        %1835 = vmatprep.mubr.bf16.mxu0 %v1659
        %1836 = vmatmul.mubr.bf16.gmra.mxu0 %v1658
        %v1837 = vpop.f32.mrf.mxu0
        %v1838 = vadd.f32 %v1697, %v1837
        %v1839 = vpop.f32.mrf.mxu0
        %v1840 = vpop.f32.mrf.mxu0
        %v1841 = vadd.f32 %v1697, %v1840
        %v1842 = vpop.f32.mrf.mxu0
        %1843 = vdwg.mxu0
        %v1844 = vadd.f32 %v1830, %v1481
        %v1845 = vadd.f32 %v1833, %v1482
        %v1846 = vadd.f32 %v1838, %v1483
        %v1847 = vadd.f32 %v1841, %v1484
        %v1848 = vld [vmem:[%s14] sm:$0x1]
        %v1849 = vld [vmem:[%s15] sm:$0x1]
        %1850 = vadd.xlane.f32.xlu0 %v1844
        %v1851 = vpop.xlane.xlu0 %1850
        %1852 = vadd.xlane.f32.xlu0 %v1845
        %v1853 = vpop.xlane.xlu0 %1852
        %1854 = vadd.xlane.f32.xlu0 %v1846
        %v1855 = vpop.xlane.xlu0 %1854
        %1856 = vadd.xlane.f32.xlu0 %v1847
        %v1857 = vpop.xlane.xlu0 %1856
        %v1858 = vmul.f32 %v1851, %v1428
        %v1859 = vmul.f32 %v1853, %v1428
        %v1860 = vmul.f32 %v1855, %v1428
        %v1861 = vmul.f32 %v1857, %v1428
        %v1862 = vsub.f32 %v1844, %v1858
        %v1863 = vsub.f32 %v1845, %v1859
        %v1864 = vsub.f32 %v1846, %v1860
        %v1865 = vsub.f32 %v1847, %v1861
        %v1866 = vmul.f32 %v1862, %v1862
        %v1867 = vmul.f32 %v1863, %v1863
        %v1868 = vmul.f32 %v1864, %v1864
        %v1869 = vmul.f32 %v1865, %v1865
        %1870 = vadd.xlane.f32.xlu0 %v1866
        %v1871 = vpop.xlane.xlu0 %1870
        %1872 = vadd.xlane.f32.xlu0 %v1867
        %v1873 = vpop.xlane.xlu0 %1872
        %1874 = vadd.xlane.f32.xlu0 %v1868
        %v1875 = vpop.xlane.xlu0 %1874
        %1876 = vadd.xlane.f32.xlu0 %v1869
        %v1877 = vpop.xlane.xlu0 %1876
        %v1878 = vmul.f32 %v1871, %v1428
        %v1879 = vmul.f32 %v1873, %v1428
        %v1880 = vmul.f32 %v1875, %v1428
        %v1881 = vmul.f32 %v1877, %v1428
        %v1882 = vadd.f32 %v1878, 1e-05
        %v1883 = vadd.f32 %v1879, 1e-05
        %v1884 = vadd.f32 %v1880, 1e-05
        %v1885 = vadd.f32 %v1881, 1e-05
        %v1886 = vrsqrt.pop %v1882
        %v1887 = vrsqrt.pop %v1883
        %v1888 = vrsqrt.pop %v1884
        %v1889 = vrsqrt.pop %v1885
        %v1890 = vmul.f32 %v1862, %v1886
        %v1891 = vmul.f32 %v1863, %v1887
        %v1892 = vmul.f32 %v1864, %v1888
        %v1893 = vmul.f32 %v1865, %v1889
        %v1895 = vlaneseq
        %v1896 = vshrl.u32 %v1895, 7
        %v1897 = vsub.s32 0, %v1896
        %v1898 = vrot.slane %v1848, %v1897
        %v1900 = vmul.f32 %v1890, %v1898
        %v1901 = vmul.f32 %v1891, %v1898
        %v1902 = vmul.f32 %v1892, %v1898
        %v1903 = vmul.f32 %v1893, %v1898
        %v1905 = vlaneseq
        %v1906 = vshrl.u32 %v1905, 7
        %v1907 = vsub.s32 0, %v1906
        %v1908 = vrot.slane %v1849, %v1907
        %v1910 = vadd.f32 %v1900, %v1908
        %v1911 = vadd.f32 %v1901, %v1908
        %v1912 = vadd.f32 %v1902, %v1908
        %v1913 = vadd.f32 %v1903, %v1908
        %1914 = vst [vmem:[%s706] sm:$0xff] %v1910
        %1915 = vst [vmem:[%s706 + $0x8] sm:$0xff] %v1911
        %1916 = vst [vmem:[%s706 + $0x10] sm:$0xff] %v1912
        %1917 = vst [vmem:[%s706 + $0x18] sm:$0xff] %v1913
        %s1918 = sand.u32 %s398, 1
        %s1919 = scalar_lea.sflag [#allocation4], %s1918
        %s1920 = sand.u32 %s398, 1
        %s1921 = smul.addr %s1920, 32
        %s1922 = scalar_lea.vmem [#allocation17], %s1921
        // Predicated region
        $region121: #{tpu_custom_call.1} parent=83 // pred_check
          %p1923 = pneg %p408
        $region122: #{tpu_custom_call.1} parent=83 // pred_check_branch
          %1925 = sbr.rel (%p1923) target = $region124
        $region123: #{tpu_custom_call.1} parent=83 // pred_region
          %s1926 = smul.u32 2, %s39
          %s1928 = ssub.s32 512, 512
          %1929 = vsyncadd %s1919, %s1928
          %s1930 = smul.addr %s1926, 2
          %s1931 = smul.addr %s1930, 128
          %s1932 = scalar_lea.hbm %s16, %s1931
          %s1933 = sshll.u32 %s1922, 4
          %s1934 = int_to_ptr.vmem [resolvable:$true] %s1933
          %1939 = dma.vmem_to_hbm [thread:$0]  %s1934, 512, %s1932, %s1919, 128, 128, 8
        $region124: #{tpu_custom_call.1} parent=83 // pred_fallthru
          _
      $region84: #{tpu_custom_call.1} parent=5 // pred_fallthru
        _
      %p1940 = scmp.le.s32.totalorder 2, %s34
      // Predicated region
      $region125: #{tpu_custom_call.1} parent=5 // pred_check
        %p1941 = pneg %p1940
      $region126: #{tpu_custom_call.1} parent=5 // pred_check_branch
        %1943 = sbr.rel (%p1941) target = $region128
      $region127: #{tpu_custom_call.1} parent=5 // pred_region
        %s1944 = ssub.s32 %s34, 2
        // Predicated region
        $region129: #{tpu_custom_call.1} parent=127 // pred_check
          %p1945 = pneg %p414
        $region130: #{tpu_custom_call.1} parent=127 // pred_check_branch
          %1947 = sbr.rel (%p1945) target = $region132
        $region131: #{tpu_custom_call.1} parent=127 // pred_region
          %s1948 = sand.u32 %s399, 1
          %s1949 = scalar_lea.sflag [#allocation4], %s1948
          %s1950 = sand.u32 %s399, 1
          %s1951 = smul.addr %s1950, 32
          %s1952 = scalar_lea.vmem [#allocation17], %s1951
          %1953 = dma.done %s1949, 512
        $region132: #{tpu_custom_call.1} parent=127 // pred_fallthru
          _
      $region128: #{tpu_custom_call.1} parent=5 // pred_fallthru
        _
    $region6: #{tpu_custom_call.1} parent=1 // loop_footer
      %s38 = sadd.s32 1, %s34
    $region7: #{tpu_custom_call.1} parent=1 // loop_footer_branch
      %33 = sbr.rel target = $region3
    $region8: #{tpu_custom_call.1} parent=1 // loop_exit
      _
    %1954 = vsyncpa [#allocation3], 1
    %s1955 = scalar_lea.sflag [#allocation3], 1
    %1956 = vsyncpa %s1955, 1
    %1957 = vsyncpa [#allocation6], 1
    %s1958 = scalar_lea.sflag [#allocation6], 1
    %1959 = vsyncpa %s1958, 1
    %1960 = vsyncpa [#allocation9], 1
    %1961 = vsyncpa [#allocation12], 1
    %1962 = vsyncpa [#allocation15], 1
    %1963 = vsyncpa [#allocation4], 1
    %s1964 = scalar_lea.sflag [#allocation4], 1
    %1965 = vsyncpa %s1964, 1

</llo_original>
